<compile_context>
chip_gen: v6e
topology: v6e:2x2x1
jax: 0.10.0
libtpu: 0.0.40
codegen_flags: <defaults>
</compile_context>

<pallas_src>
import functools
import math

import jax
import jax.numpy as jnp
from jax.experimental import pallas as pl
from jax.experimental.pallas import tpu as pltpu

_LANES = 128
_HALF_LOG_2PI = 0.5 * math.log(2.0 * math.pi)
_MIN_PALLAS_ELEMENTS = 1 << 18  # below this, plain XLA wins by a wide margin


def _round_up(x: int, m: int) -> int:
    return ((x + m - 1) // m) * m


def _default_row_tile() -> int:
    # v6e / v7x: 2048-row tiles (vmem_limit_bytes is set explicitly below).
    # v5e: keep 1024 — tighter scoped-VMEM default and deeply HBM-bound anyway.
    try:
        kind = jax.devices()[0].device_kind.lower()
    except Exception:
        kind = ""
    if "v5" in kind:
        return 1024
    return 2048


def _jnp_reward_nll_mse(mean, reward, std):
    """Fast path for small/medium tensors: let XLA fuse it."""
    mu = jnp.asarray(mean).astype(jnp.float32)
    x = jnp.asarray(reward).astype(jnp.float32)
    sd = jnp.asarray(std).astype(jnp.float32)
    diff = x - mu
    z = diff / sd
    log_prob = -0.5 * z * z - jnp.log(sd) - jnp.float32(_HALF_LOG_2PI)
    nll = -jnp.mean(log_prob)
    mse = jnp.mean(jnp.square(jax.lax.stop_gradient(mu) - x))
    return nll, mse


def _reward_loss_kernel(*refs, mode, const_std, row_tile, last_rows, partial_last):
    """Per-tile Gaussian log-prob + squared error, folded to an (8, 128) partial sum.

    mode: "const"  -> refs = (mean, reward, lp_out, se_out), std is a Python float
          "smem"   -> refs = (std_smem, mean, reward, lp_out, se_out), std is an SMEM scalar
          "tensor" -> refs = (std, mean, reward, lp_out, se_out), std is a full VMEM stream
    """
    if mode == "const":
        mean_ref, reward_ref, lp_out, se_out = refs
    else:
        std_ref, mean_ref, reward_ref, lp_out, se_out = refs

    mu = mean_ref[...].astype(jnp.float32)
    x = reward_ref[...].astype(jnp.float32)
    diff = x - mu
    sq_err = diff * diff  # reused for both the NLL and the MSE

    if mode == "tensor":
        sd = std_ref[...].astype(jnp.float32)
        log_sd = jnp.log(sd)                      # EUP
        inv_var = jnp.exp(-2.0 * log_sd)          # EUP; keeps the divide off the VALU
        lp = -0.5 * (sq_err * inv_var) - log_sd - jnp.float32(_HALF_LOG_2PI)
    elif mode == "smem":
        sd = std_ref[0].astype(jnp.float32)       # per-block scalar, negligible cost
        inv2 = 1.0 / (sd * sd)
        const_term = jnp.log(sd) + jnp.float32(_HALF_LOG_2PI)
        lp = -0.5 * (sq_err * inv2) - const_term
    else:  # const
        const_term = jnp.float32(math.log(const_std) + _HALF_LOG_2PI)
        if const_std == 1.0:
            # denoised_mdp's actual reward head: unit std, no extra multiplies.
            lp = -0.5 * sq_err - const_term
        else:
            inv2 = jnp.float32(1.0 / (const_std * const_std))
            lp = -0.5 * (sq_err * inv2) - const_term

    g = row_tile // 8

    def fold_store(lp_v, se_v):
        # Pure VPU folds to one vreg-shaped (8, 128) partial per output.
        if g == 1:
            lp_out[...] = lp_v
            se_out[...] = se_v
        else:
            lp_out[...] = jnp.sum(lp_v.reshape(g, 8, _LANES), axis=0)
            se_out[...] = jnp.sum(se_v.reshape(g, 8, _LANES), axis=0)

    if not partial_last:
        # Common case: no mask work anywhere in the hot loop.
        fold_store(lp, sq_err)
    else:
        is_last = pl.program_id(0) == pl.num_programs(0) - 1

        @pl.when(jnp.logical_not(is_last))
        def _():
            fold_store(lp, sq_err)

        @pl.when(is_last)
        def _():
            # Only the last (partial) block pays for masking. Garbage rows read
            # from the out-of-bounds block region (possibly NaN through log/exp)
            # are discarded by the select AFTER the compute.
            row_ids = jax.lax.broadcasted_iota(jnp.int32, (row_tile, _LANES), 0)
            valid = row_ids < last_rows
            fold_store(jnp.where(valid, lp, 0.0), jnp.where(valid, sq_err, 0.0))


def reward_nll_mse(pred_mean, reward, pred_std=1.0, *, row_tile=None,
                   min_pallas_elements=_MIN_PALLAS_ELEMENTS):
    """Fused:
         nll = -mean( Normal(pred_mean, pred_std).log_prob(reward) )
         mse =  mean( (pred_mean - reward)**2 )
    `pred_std` may be a Python scalar, a size-1 array (SMEM scalar), or an
    array matching `pred_mean` (full std input stream).
    """
    pred_mean = jnp.asarray(pred_mean)
    reward = jnp.asarray(reward)
    n = int(pred_mean.size)

    std_is_number = isinstance(pred_std, (int, float))

    # ---- small-input fast path: the real (T, B) reward tensors land here ----
    if n < min_pallas_elements:
        std = pred_std if std_is_number else jnp.asarray(pred_std)
        return _jnp_reward_nll_mse(pred_mean, reward, std)

    # ---- Pallas path ----
    rows = pl.cdiv(n, _LANES)
    padded_n = rows * _LANES
    pad = padded_n - n  # 0..127

    if row_tile is None:
        row_tile = _default_row_tile()
    # Multiple of 32 sublanes (legal for f32/bf16/int8 input blocks); cap so the
    # grid has >= 4 blocks -> both v7x TensorCores get work on the parallel axis.
    cap = _round_up(pl.cdiv(rows, 4), 32)
    row_tile = max(32, min(_round_up(row_tile, 32), cap))
    num_blocks = pl.cdiv(rows, row_tile)
    last_rows = rows - (num_blocks - 1) * row_tile
    partial_last = last_rows < row_tile

    def _prep(a, pad_value):
        # Keep the storage dtype (bf16 stays bf16 -> half the HBM bytes).
        flat = jnp.ravel(jnp.asarray(a))
        if pad:
            # Only copy when the element count is not lane-aligned, and only to
            # the next multiple of 128 (<= 127 extra elements); their analytic
            # contribution is removed in the epilogue below.
            flat = jnp.pad(flat, (0, pad), constant_values=pad_value)
        return flat.reshape(rows, _LANES)

    vspec = pl.BlockSpec((row_tile, _LANES), lambda i: (i, 0))

    inputs = []
    in_specs = []
    const_std = None
    std_scalar = None
    if std_is_number:
        mode = "const"
        const_std = float(pred_std)
    else:
        std_arr = jnp.asarray(pred_std)
        if std_arr.size == 1:
            # Scalar-ish std: one SMEM word instead of a full HBM stream.
            mode = "smem"
            std_scalar = std_arr.reshape(1).astype(jnp.float32)
            inputs.append(std_scalar)
            in_specs.append(pl.BlockSpec(memory_space=pltpu.MemorySpace.SMEM))
        else:
            mode = "tensor"
            if std_arr.shape != pred_mean.shape:
                # TODO(synk): lower-rank (non-scalar) std is materialized at full
                # size here; a per-row/per-column SMEM table would avoid it.
                std_arr = jnp.broadcast_to(std_arr, pred_mean.shape)
            inputs.append(_prep(std_arr, 1.0))  # pad std with 1 (finite log)
            in_specs.append(vspec)
    inputs.append(_prep(pred_mean, 0.0))
    in_specs.append(vspec)
    inputs.append(_prep(reward, 0.0))
    in_specs.append(vspec)

    out_spec = pl.BlockSpec((8, _LANES), lambda i: (i, 0))

    lp_part, se_part = pl.pallas_call(
        functools.partial(
            _reward_loss_kernel,
            mode=mode,
            const_std=const_std,
            row_tile=row_tile,
            last_rows=last_rows,
            partial_last=partial_last,
        ),
        out_shape=(
            jax.ShapeDtypeStruct((num_blocks * 8, _LANES), jnp.float32),
            jax.ShapeDtypeStruct((num_blocks * 8, _LANES), jnp.float32),
        ),
        grid_spec=pltpu.PrefetchScalarGridSpec(
            num_scalar_prefetch=0,
            grid=(num_blocks,),
            in_specs=in_specs,
            out_specs=[out_spec, out_spec],
        ),
        compiler_params=pltpu.CompilerParams(
            # No cross-iteration accumulator -> the row axis is embarrassingly
            # parallel; on v7x both TensorCores take chunks of it.
            dimension_semantics=("parallel",),
            # 3 streams x 2 buffers x (row_tile x 128 x 4B) + full-tile
            # temporaries stays well under 32 MiB on every generation.
            vmem_limit_bytes=32 * 1024 * 1024,
        ),
    )(*inputs)

    lp_sum = jnp.sum(lp_part)  # tiny final reduce in plain JAX
    se_sum = jnp.sum(se_part)

    if pad:
        # Each lane-pad element contributes lp = -log(sd_pad) - 0.5*log(2*pi)
        # and se = 0; remove the known lp contribution analytically.
        if mode == "tensor":
            log_sd_pad = 0.0                      # std padded with 1.0
        elif mode == "const":
            log_sd_pad = math.log(const_std)
        else:  # smem
            log_sd_pad = jnp.log(std_scalar[0])
        lp_sum = lp_sum + jnp.float32(pad) * (log_sd_pad + _HALF_LOG_2PI)

    inv_n = jnp.float32(1.0 / n)
    nll = -(lp_sum * inv_n)
    mse = se_sum * inv_n
    return nll, mse


class RewardLoss:
    """JAX/Pallas port of denoised_mdp RewardLoss.forward (no learnable params)."""

    def __init__(self, weight: float = 1.0, name: str = "reward_loss"):
        if weight < 0:
            raise ValueError("Expected weight >= 0")
        self.weight = weight
        self.name = name

    def __call__(self, reward, reward_prediction_mean, reward_prediction_std=1.0):
        nll, mse = reward_nll_mse(
            reward_prediction_mean, reward, reward_prediction_std
        )
        return {self.name: (self.weight, nll), self.name + "_mse": (0, mse)}


def _ref_reward_loss(mean, std, reward):
    """Pure-JAX reference (matches torch.distributions.Normal.log_prob / mse_loss)."""
    log_prob = (
        -0.5 * ((reward - mean) / std) ** 2 - jnp.log(std) - 0.5 * jnp.log(2.0 * jnp.pi)
    )
    nll = -log_prob.mean()
    mse = jnp.mean((mean - reward) ** 2)
    return nll, mse


if __name__ == "__main__":
    ok = True
    loss_mod = RewardLoss(weight=1.0)

    # ---- the actual denoised_mdp-sized workload: (T, B) = (8, 2) (fast path) ----
    T, B = 8, 2
    k1, k2, k3 = jax.random.split(jax.random.PRNGKey(0), 3)
    reward = jax.random.normal(k1, (T, B), jnp.float32)
    pred_mean = jax.random.normal(k2, (T, B), jnp.float32)
    pred_std = jax.nn.softplus(jax.random.normal(k3, (T, B), jnp.float32)) + 0.1

    out = loss_mod(reward, pred_mean)                      # unit-std Normal
    jax.block_until_ready(out)
    ref_nll, ref_mse = _ref_reward_loss(pred_mean, jnp.float32(1.0), reward)
    w, nll = out["reward_loss"]
    w_mse, mse = out["reward_loss_mse"]
    ok &= (w == 1.0) and (w_mse == 0)
    ok &= bool(jnp.allclose(nll, ref_nll, rtol=1e-5, atol=1e-5))
    ok &= bool(jnp.allclose(mse, ref_mse, rtol=1e-5, atol=1e-5))

    out2 = loss_mod(reward, pred_mean, pred_std)           # tensor-std Normal
    jax.block_until_ready(out2)
    ref_nll2, ref_mse2 = _ref_reward_loss(pred_mean, pred_std, reward)
    ok &= bool(jnp.allclose(out2["reward_loss"][1], ref_nll2, rtol=1e-5, atol=1e-5))
    ok &= bool(jnp.allclose(out2["reward_loss_mse"][1], ref_mse2, rtol=1e-5, atol=1e-5))

    # ---- larger-than-threshold shape to exercise the Pallas kernel itself ----
    # 517*643 = 332,431 elements: > threshold, not a multiple of 128 (exercises
    # the minimal lane-pad correction) and rows % row_tile != 0 (exercises the
    # pl.when-gated partial last block).
    Tl, Bl = 517, 643
    kk1, kk2, kk3 = jax.random.split(jax.random.PRNGKey(1), 3)
    big_reward = jax.random.normal(kk1, (Tl, Bl), jnp.float32)
    big_mean = jax.random.normal(kk2, (Tl, Bl), jnp.float32)
    big_std = jax.nn.softplus(jax.random.normal(kk3, (Tl, Bl), jnp.float32)) + 0.1

    nll_c, mse_c = reward_nll_mse(big_mean, big_reward, 1.0)           # const std
    nll_t, mse_t = reward_nll_mse(big_mean, big_reward, big_std)       # tensor std
    nll_s, mse_s = reward_nll_mse(big_mean, big_reward,
                                  jnp.asarray(0.7, jnp.float32))       # SMEM scalar std
    jax.block_until_ready((nll_c, mse_c, nll_t, mse_t, nll_s, mse_s))

    r_nll_c, r_mse_c = _ref_reward_loss(big_mean, jnp.float32(1.0), big_reward)
    r_nll_t, r_mse_t = _ref_reward_loss(big_mean, big_std, big_reward)
    r_nll_s, r_mse_s = _ref_reward_loss(big_mean, jnp.float32(0.7), big_reward)
    for got, want in [(nll_c, r_nll_c), (mse_c, r_mse_c),
                      (nll_t, r_nll_t), (mse_t, r_mse_t),
                      (nll_s, r_nll_s), (mse_s, r_mse_s)]:
        ok &= bool(jnp.allclose(got, want, rtol=1e-5, atol=1e-5))

    assert ok, "Pallas RewardLoss mismatch vs reference"
    print("KERNEL_OK")
</pallas_src>

<mosaic_0001>
module attributes {stable_mosaic.version = 11 : i64} {
  func.func @_reward_loss_kernel(%arg0: i32, %arg1: memref<672x128xf32, #tpu.memory_space<vmem>>, %arg2: memref<672x128xf32, #tpu.memory_space<vmem>>, %arg3: memref<8x128xf32, #tpu.memory_space<vmem>>, %arg4: memref<8x128xf32, #tpu.memory_space<vmem>>) attributes {dimension_semantics = [#tpu.dimension_semantics<parallel>], iteration_bounds = array<i64: 4>, scalar_prefetch = 0 : i64, scratch_operands = 0 : i64, tpu.core_type = #tpu.core_type<tc>, window_params = [{transform_indices = @transform_0, window_bounds = array<i64: 672, 128>}, {transform_indices = @transform_1, window_bounds = array<i64: 672, 128>}, {transform_indices = @transform_2, window_bounds = array<i64: 8, 128>}, {transform_indices = @transform_3, window_bounds = array<i64: 8, 128>}]} {
    %c0 = arith.constant 0 : index
    %c0_0 = arith.constant 0 : index
    %0 = vector.load %arg1[%c0, %c0_0] : memref<672x128xf32, #tpu.memory_space<vmem>>, vector<672x128xf32>
    %c0_1 = arith.constant 0 : index
    %c0_2 = arith.constant 0 : index
    %1 = vector.load %arg2[%c0_1, %c0_2] : memref<672x128xf32, #tpu.memory_space<vmem>>, vector<672x128xf32>
    %2 = arith.subf %1, %0 : vector<672x128xf32>
    %3 = arith.mulf %2, %2 : vector<672x128xf32>
    %cst = arith.constant -5.000000e-01 : f32
    %4 = vector.broadcast %cst : f32 to vector<672x128xf32>
    %5 = arith.mulf %4, %3 : vector<672x128xf32>
    %cst_3 = arith.constant 0.918938517 : f32
    %6 = vector.broadcast %cst_3 : f32 to vector<672x128xf32>
    %7 = arith.subf %5, %6 : vector<672x128xf32>
    %c3_i32 = arith.constant 3 : i32
    %8 = arith.cmpi eq, %arg0, %c3_i32 : i32
    %true = arith.constant true
    %9 = arith.xori %8, %true : i1
    %10 = arith.extui %9 : i1 to i32
    %c0_i32 = arith.constant 0 : i32
    %11 = arith.cmpi ne, %10, %c0_i32 : i32
    scf.if %11 {
      %14 = vector.shape_cast %7 : vector<672x128xf32> to vector<84x8x128xf32>
      %cst_5 = arith.constant dense<0.000000e+00> : vector<8x128xf32>
      %15 = vector.multi_reduction <add>, %14, %cst_5 [0] : vector<84x8x128xf32> to vector<8x128xf32>
      %c0_6 = arith.constant 0 : index
      %c0_7 = arith.constant 0 : index
      %16 = vector.load %arg3[%c0_6, %c0_7] : memref<8x128xf32, #tpu.memory_space<vmem>>, vector<8x128xf32>
      tpu.vector_store %arg3[%c0_6, %c0_7], %15 {strides = array<i32>} : memref<8x128xf32, #tpu.memory_space<vmem>>, vector<8x128xf32>,
      %17 = vector.shape_cast %3 : vector<672x128xf32> to vector<84x8x128xf32>
      %cst_8 = arith.constant dense<0.000000e+00> : vector<8x128xf32>
      %18 = vector.multi_reduction <add>, %17, %cst_8 [0] : vector<84x8x128xf32> to vector<8x128xf32>
      %c0_9 = arith.constant 0 : index
      %c0_10 = arith.constant 0 : index
      %19 = vector.load %arg4[%c0_9, %c0_10] : memref<8x128xf32, #tpu.memory_space<vmem>>, vector<8x128xf32>
      tpu.vector_store %arg4[%c0_9, %c0_10], %18 {strides = array<i32>} : memref<8x128xf32, #tpu.memory_space<vmem>>, vector<8x128xf32>,
    } else {
    }
    %12 = arith.extui %8 : i1 to i32
    %c0_i32_4 = arith.constant 0 : i32
    %13 = arith.cmpi ne, %12, %c0_i32_4 : i32
    scf.if %13 {
      %14 = tpu.iota {dimensions = array<i32: 0>} : vector<672x128xi32>
      %c582_i32 = arith.constant 582 : i32
      %15 = vector.broadcast %c582_i32 : i32 to vector<672x128xi32>
      %16 = arith.cmpi slt, %14, %15 : vector<672x128xi32>
      %cst_5 = arith.constant 0.000000e+00 : f32
      %17 = vector.broadcast %cst_5 : f32 to vector<672x128xf32>
      %18 = arith.select %16, %7, %17 : vector<672x128xi1>, vector<672x128xf32>
      %cst_6 = arith.constant 0.000000e+00 : f32
      %19 = vector.broadcast %cst_6 : f32 to vector<672x128xf32>
      %20 = arith.select %16, %3, %19 : vector<672x128xi1>, vector<672x128xf32>
      %21 = vector.shape_cast %18 : vector<672x128xf32> to vector<84x8x128xf32>
      %cst_7 = arith.constant dense<0.000000e+00> : vector<8x128xf32>
      %22 = vector.multi_reduction <add>, %21, %cst_7 [0] : vector<84x8x128xf32> to vector<8x128xf32>
      %c0_8 = arith.constant 0 : index
      %c0_9 = arith.constant 0 : index
      %23 = vector.load %arg3[%c0_8, %c0_9] : memref<8x128xf32, #tpu.memory_space<vmem>>, vector<8x128xf32>
      tpu.vector_store %arg3[%c0_8, %c0_9], %22 {strides = array<i32>} : memref<8x128xf32, #tpu.memory_space<vmem>>, vector<8x128xf32>,
      %24 = vector.shape_cast %20 : vector<672x128xf32> to vector<84x8x128xf32>
      %cst_10 = arith.constant dense<0.000000e+00> : vector<8x128xf32>
      %25 = vector.multi_reduction <add>, %24, %cst_10 [0] : vector<84x8x128xf32> to vector<8x128xf32>
      %c0_11 = arith.constant 0 : index
      %c0_12 = arith.constant 0 : index
      %26 = vector.load %arg4[%c0_11, %c0_12] : memref<8x128xf32, #tpu.memory_space<vmem>>, vector<8x128xf32>
      tpu.vector_store %arg4[%c0_11, %c0_12], %25 {strides = array<i32>} : memref<8x128xf32, #tpu.memory_space<vmem>>, vector<8x128xf32>,
    } else {
    }
    return
  }
  func.func @transform_0(%arg0: i32) -> (i32, i32) {
    %c0_i32 = arith.constant 0 : i32
    %c0_i32_0 = arith.constant 0 : i32
    return %arg0, %c0_i32 : i32, i32
  }
  func.func @transform_1(%arg0: i32) -> (i32, i32) {
    %c0_i32 = arith.constant 0 : i32
    %c0_i32_0 = arith.constant 0 : i32
    return %arg0, %c0_i32 : i32, i32
  }
  func.func @transform_2(%arg0: i32) -> (i32, i32) {
    %c0_i32 = arith.constant 0 : i32
    %c0_i32_0 = arith.constant 0 : i32
    return %arg0, %c0_i32 : i32, i32
  }
  func.func @transform_3(%arg0: i32) -> (i32, i32) {
    %c0_i32 = arith.constant 0 : i32
    %c0_i32_0 = arith.constant 0 : i32
    return %arg0, %c0_i32 : i32, i32
  }
}

</mosaic_0001>

<llo_original>
// kernel: tpu_custom_call.1
$region0: #{tpu_custom_call.1}
  #allocation0 [shape = 'u32[]', space=smem, size = 0x4, offset = 0x4, fixed_abs, tag = 'smem constant byte address 0x4 - core index']
  #allocation1 [shape = 'u32[144,128]{1,0:T(1,128)}', space=vmem, size = 0x12000, scoped, tag = 'internal scratch']
  %s0 = inlined_call_operand.hbm [shape: f32[2598,128], index: 0, kind: input, shape index: {}]
  %s1 = inlined_call_operand.hbm [shape: f32[2598,128], index: 1, kind: input, shape index: {}]
  %s2 = inlined_call_operand.hbm [shape: f32[32,128], index: 2, kind: output, shape index: {0}]
  %s3 = inlined_call_operand.hbm [shape: f32[32,128], index: 3, kind: output, shape index: {1}]
  %4 = xla_tuple %s2, %s3
  %s5 = sld [smem:[#allocation0]]
  $region65: #{tpu_custom_call.1} parent=0
    _
  %s7 = ssub.s32 1, %s5
  %s8 = scalar_select 0, %s7, %s5
  $region1: #{tpu_custom_call.1} parent=0
    #allocation2 [shape = 'u8[688128]{0}', space=vmem, size = 0xa8000, scoped, tag = 'input window, operand 0']
    #allocation3 [shape = 's32[2]{0}', space=sflag, size = 0x8, scoped, tag = 'scoped memory for tpu_custom_call.1']
    #allocation4 [shape = 's32[2]{0}', space=sflag, size = 0x8, scoped, tag = 'scoped memory for tpu_custom_call.1']
    #allocation5 [shape = 'u8[688128]{0}', space=vmem, size = 0xa8000, scoped, tag = 'input window, operand 1']
    #allocation6 [shape = 's32[2]{0}', space=sflag, size = 0x8, scoped, tag = 'scoped memory for tpu_custom_call.1']
    #allocation7 [shape = 'u8[8192]{0}', space=vmem, size = 0x2000, scoped, tag = 'output window, operand 0']
    #allocation8 [shape = 'u8[8192]{0}', space=vmem, size = 0x2000, scoped, tag = 'output window, operand 1']
    #allocation9 [shape = 's32[2]{0}', space=sflag, size = 0x8, scoped, tag = 'scoped memory for tpu_custom_call.1']
    %9 = vsyncpa [#allocation3], 0
    %s10 = scalar_lea.sflag [#allocation3], 1
    %11 = vsyncpa %s10, 0
    %12 = vsyncpa [#allocation6], 0
    %s13 = scalar_lea.sflag [#allocation6], 1
    %14 = vsyncpa %s13, 0
    %15 = vsyncpa [#allocation4], 0
    %s16 = scalar_lea.sflag [#allocation4], 1
    %17 = vsyncpa %s16, 0
    %18 = vsyncpa [#allocation9], 0
    %s19 = scalar_lea.sflag [#allocation9], 1
    %20 = vsyncpa %s19, 0
    loop: start=0, step=1, limit=6
    $region2: #{tpu_custom_call.1} parent=1 // loop_pre_header
      _
    $region3: #{tpu_custom_call.1} parent=1 // loop_header
      %s22 = sphi 0, %s26
      %p23 = scmp.ge.s32.totalorder %s22, 6
      %s32 = sphi 0, %s34
      %s35 = sphi 0, %s32
      %s36 = sphi 0, %s35
      %s52 = sphi 0, %s36
      %s58 = sphi 0, %s60
      %s61 = sphi 0, %s58
      %s62 = sphi 0, %s61
      %s78 = sphi 0, %s62
      %s84 = sphi 0, %s86
      %s87 = sphi 0, %s84
      %s88 = sphi 0, %s87
      %s104 = sphi 0, %s88
      %s110 = sphi 0, %s112
      %s113 = sphi 0, %s110
      %s114 = sphi 0, %s113
      %s130 = sphi 0, %s114
    $region4: #{tpu_custom_call.1} parent=1 // loop_header_branch
      %25 = sbr.rel (%p23) target = $region8
    $region5: #{tpu_custom_call.1} parent=1 // loop_body
      %s27 = ssub.s32 %s22, 1
      %s28 = ssub.s32 %s22, 2
      %s29 = sadd.s32 %s22, 1
      %s30 = ssub.s32 %s22, %s29
      %p31 = scmp.eq.s32.totalorder %s30, 0
      %s33 = sadd.s32 %s32, 1
      %s34 = scalar_select %p31, %s32, %s33
      %p37 = pneg %p31
      %p38 = scmp.eq.s32.totalorder %s22, 3
      %p39 = por %p37, %p38
      %p40 = scmp.ne.s32.totalorder %s32, %s35
      %p41 = scmp.eq.s32.totalorder %s22, 0
      %p42 = por %p40, %p41
      %p43 = scmp.ne.s32.totalorder %s32, %s35
      %p44 = scmp.eq.s32.totalorder %s27, 3
      %p45 = por %p43, %p44
      %p46 = scmp.ne.s32.totalorder %s35, %s36
      %p47 = scmp.eq.s32.totalorder %s27, 0
      %p48 = por %p46, %p47
      %p49 = scmp.ne.s32.totalorder %s35, %s36
      %p50 = scmp.eq.s32.totalorder %s28, 3
      %p51 = por %p49, %p50
      %p53 = scmp.ne.s32.totalorder %s36, %s52
      %p54 = scmp.eq.s32.totalorder %s28, 0
      %p55 = por %p53, %p54
      %s56 = ssub.s32 %s22, %s29
      %p57 = scmp.eq.s32.totalorder %s56, 0
      %s59 = sadd.s32 %s58, 1
      %s60 = scalar_select %p57, %s58, %s59
      %p63 = pneg %p57
      %p64 = scmp.eq.s32.totalorder %s22, 3
      %p65 = por %p63, %p64
      %p66 = scmp.ne.s32.totalorder %s58, %s61
      %p67 = scmp.eq.s32.totalorder %s22, 0
      %p68 = por %p66, %p67
      %p69 = scmp.ne.s32.totalorder %s58, %s61
      %p70 = scmp.eq.s32.totalorder %s27, 3
      %p71 = por %p69, %p70
      %p72 = scmp.ne.s32.totalorder %s61, %s62
      %p73 = scmp.eq.s32.totalorder %s27, 0
      %p74 = por %p72, %p73
      %p75 = scmp.ne.s32.totalorder %s61, %s62
      %p76 = scmp.eq.s32.totalorder %s28, 3
      %p77 = por %p75, %p76
      %p79 = scmp.ne.s32.totalorder %s62, %s78
      %p80 = scmp.eq.s32.totalorder %s28, 0
      %p81 = por %p79, %p80
      %s82 = ssub.s32 %s22, %s29
      %p83 = scmp.eq.s32.totalorder %s82, 0
      %s85 = sadd.s32 %s84, 1
      %s86 = scalar_select %p83, %s84, %s85
      %p89 = pneg %p83
      %p90 = scmp.eq.s32.totalorder %s22, 3
      %p91 = por %p89, %p90
      %p92 = scmp.ne.s32.totalorder %s84, %s87
      %p93 = scmp.eq.s32.totalorder %s22, 0
      %p94 = por %p92, %p93
      %p95 = scmp.ne.s32.totalorder %s84, %s87
      %p96 = scmp.eq.s32.totalorder %s27, 3
      %p97 = por %p95, %p96
      %p98 = scmp.ne.s32.totalorder %s87, %s88
      %p99 = scmp.eq.s32.totalorder %s27, 0
      %p100 = por %p98, %p99
      %p101 = scmp.ne.s32.totalorder %s87, %s88
      %p102 = scmp.eq.s32.totalorder %s28, 3
      %p103 = por %p101, %p102
      %p105 = scmp.ne.s32.totalorder %s88, %s104
      %p106 = scmp.eq.s32.totalorder %s28, 0
      %p107 = por %p105, %p106
      %s108 = ssub.s32 %s22, %s29
      %p109 = scmp.eq.s32.totalorder %s108, 0
      %s111 = sadd.s32 %s110, 1
      %s112 = scalar_select %p109, %s110, %s111
      %p115 = pneg %p109
      %p116 = scmp.eq.s32.totalorder %s22, 3
      %p117 = por %p115, %p116
      %p118 = scmp.ne.s32.totalorder %s110, %s113
      %p119 = scmp.eq.s32.totalorder %s22, 0
      %p120 = por %p118, %p119
      %p121 = scmp.ne.s32.totalorder %s110, %s113
      %p122 = scmp.eq.s32.totalorder %s27, 3
      %p123 = por %p121, %p122
      %p124 = scmp.ne.s32.totalorder %s113, %s114
      %p125 = scmp.eq.s32.totalorder %s27, 0
      %p126 = por %p124, %p125
      %p127 = scmp.ne.s32.totalorder %s113, %s114
      %p128 = scmp.eq.s32.totalorder %s28, 3
      %p129 = por %p127, %p128
      %p131 = scmp.ne.s32.totalorder %s114, %s130
      %p132 = scmp.eq.s32.totalorder %s28, 0
      %p133 = por %p131, %p132
      %p134 = scmp.le.s32.totalorder 1, %s22
      %p135 = scmp.lt.s32.totalorder %s22, 5
      %p136 = pnand %p134, %p135
      %p137 = pneg %p136
      // Predicated region
      $region9: #{tpu_custom_call.1} parent=5 // pred_check
        _
      $region10: #{tpu_custom_call.1} parent=5 // pred_check_branch
        %139 = sbr.rel (%p136) target = $region12
      $region11: #{tpu_custom_call.1} parent=5 // pred_region
        %s140 = ssub.s32 %s22, 1
      $region12: #{tpu_custom_call.1} parent=5 // pred_fallthru
        _
      %p141 = scmp.lt.s32.totalorder %s22, 4
      // Predicated region
      $region13: #{tpu_custom_call.1} parent=5 // pred_check
        %p142 = pneg %p141
      $region14: #{tpu_custom_call.1} parent=5 // pred_check_branch
        %144 = sbr.rel (%p142) target = $region16
      $region15: #{tpu_custom_call.1} parent=5 // pred_region
        // Predicated region
        $region17: #{tpu_custom_call.1} parent=15 // pred_check
          %p145 = pneg %p42
        $region18: #{tpu_custom_call.1} parent=15 // pred_check_branch
          %147 = sbr.rel (%p145) target = $region20
        $region19: #{tpu_custom_call.1} parent=15 // pred_region
          %s148 = sand.u32 %s32, 1
          %s149 = scalar_lea.sflag [#allocation3], %s148
          %s150 = sand.u32 %s32, 1
          %s151 = smul.addr %s150, 672
          %s152 = scalar_lea.vmem [#allocation2], %s151
          %s153 = smul.u32 84, %s22
          %s154 = ssub.s32 325, %s153
          %p155 = scmp.lt.s32.totalorder %s154, 84
          %s156 = scalar_select %p155, %s154, 84
          %s157 = smul.u32 128, %s156
          %s159 = ssub.s32 10752, %s157
          %160 = vsyncadd %s149, %s159
          %p161 = scmp.ne.s32.totalorder 0, %s157
          %s162 = smul.addr %s153, 128
          %s163 = scalar_lea.hbm %s0, %s162
          %s164 = smul.u32 8, %s156
          %s165 = sshll.u32 %s152, 4
          %s166 = int_to_ptr.vmem [resolvable:$true] %s165
          %s167 = sshll.u32 %s164, 4
          %171 = dma.hbm_to_vmem [thread:$0]  (%p161), %s163, %s167, %s166, %s149, 128, 128, 8
        $region20: #{tpu_custom_call.1} parent=15 // pred_fallthru
          _
        // Predicated region
        $region21: #{tpu_custom_call.1} parent=15 // pred_check
          %p172 = pneg %p68
        $region22: #{tpu_custom_call.1} parent=15 // pred_check_branch
          %174 = sbr.rel (%p172) target = $region24
        $region23: #{tpu_custom_call.1} parent=15 // pred_region
          %s175 = sand.u32 %s58, 1
          %s176 = scalar_lea.sflag [#allocation6], %s175
          %s177 = sand.u32 %s58, 1
          %s178 = smul.addr %s177, 672
          %s179 = scalar_lea.vmem [#allocation5], %s178
          %s180 = smul.u32 84, %s22
          %s181 = ssub.s32 325, %s180
          %p182 = scmp.lt.s32.totalorder %s181, 84
          %s183 = scalar_select %p182, %s181, 84
          %s184 = smul.u32 128, %s183
          %s186 = ssub.s32 10752, %s184
          %187 = vsyncadd %s176, %s186
          %p188 = scmp.ne.s32.totalorder 0, %s184
          %s189 = smul.addr %s180, 128
          %s190 = scalar_lea.hbm %s1, %s189
          %s191 = smul.u32 8, %s183
          %s192 = sshll.u32 %s179, 4
          %s193 = int_to_ptr.vmem [resolvable:$true] %s192
          %s194 = sshll.u32 %s191, 4
          %198 = dma.hbm_to_vmem [thread:$0]  (%p188), %s190, %s194, %s193, %s176, 128, 128, 8
        $region24: #{tpu_custom_call.1} parent=15 // pred_fallthru
          _
      $region16: #{tpu_custom_call.1} parent=5 // pred_fallthru
        _
      %p199 = scmp.le.s32.totalorder 1, %s22
      %p200 = scmp.lt.s32.totalorder %s22, 5
      %p201 = pnand %p199, %p200
      %p202 = pneg %p201
      // Predicated region
      $region25: #{tpu_custom_call.1} parent=5 // pred_check
        _
      $region26: #{tpu_custom_call.1} parent=5 // pred_check_branch
        %204 = sbr.rel (%p201) target = $region28
      $region27: #{tpu_custom_call.1} parent=5 // pred_region
        %s205 = ssub.s32 %s22, 1
        %s206 = sand.u32 %s35, 1
        %s207 = scalar_lea.sflag [#allocation3], %s206
        %s208 = sand.u32 %s35, 1
        %s209 = smul.addr %s208, 672
        %s210 = scalar_lea.vmem [#allocation2], %s209
        // Predicated region
        $region29: #{tpu_custom_call.1} parent=27 // pred_check
          %p211 = pneg %p48
        $region30: #{tpu_custom_call.1} parent=27 // pred_check_branch
          %213 = sbr.rel (%p211) target = $region32
        $region31: #{tpu_custom_call.1} parent=27 // pred_region
          %214 = dma.done %s207, 10752
        $region32: #{tpu_custom_call.1} parent=27 // pred_fallthru
          _
        %s215 = sand.u32 %s61, 1
        %s216 = scalar_lea.sflag [#allocation6], %s215
        %s217 = sand.u32 %s61, 1
        %s218 = smul.addr %s217, 672
        %s219 = scalar_lea.vmem [#allocation5], %s218
        // Predicated region
        $region33: #{tpu_custom_call.1} parent=27 // pred_check
          %p220 = pneg %p74
        $region34: #{tpu_custom_call.1} parent=27 // pred_check_branch
          %222 = sbr.rel (%p220) target = $region36
        $region35: #{tpu_custom_call.1} parent=27 // pred_region
          %223 = dma.done %s216, 10752
        $region36: #{tpu_custom_call.1} parent=27 // pred_fallthru
          _
        %s224 = sand.u32 %s35, 1
        %s225 = scalar_lea.sflag [#allocation3], %s224
        %s226 = sand.u32 %s35, 1
        %s227 = smul.addr %s226, 672
        %s228 = scalar_lea.vmem [#allocation2], %s227
        %p229 = pneg %p48
        %p230 = pneg %p45
        %s231 = sand.u32 %s61, 1
        %s232 = scalar_lea.sflag [#allocation6], %s231
        %s233 = sand.u32 %s61, 1
        %s234 = smul.addr %s233, 672
        %s235 = scalar_lea.vmem [#allocation5], %s234
        %p236 = pneg %p74
        %p237 = pneg %p71
        %p238 = pneg %p100
        %p239 = pneg %p97
        %s240 = sand.u32 %s87, 1
        %s241 = scalar_lea.sflag [#allocation4], %s240
        %s242 = sand.u32 %s87, 1
        %s243 = smul.addr %s242, 8
        %s244 = scalar_lea.vmem [#allocation7], %s243
        %p245 = pneg %p126
        %p246 = pneg %p123
        %s247 = sand.u32 %s113, 1
        %s248 = scalar_lea.sflag [#allocation9], %s247
        %s249 = sand.u32 %s113, 1
        %s250 = smul.addr %s249, 8
        %s251 = scalar_lea.vmem [#allocation8], %s250
        %s252 = smul.u32 84, %s27
        %s253 = ssub.s32 325, %s252
        %p254 = scmp.lt.s32.totalorder %s253, 84
        %s255 = scalar_select %p254, %s253, 84
        %s256 = smul.u32 128, %s255
        %s257 = smul.u32 84, %s27
        %s258 = ssub.s32 325, %s257
        %p259 = scmp.lt.s32.totalorder %s258, 84
        %s260 = scalar_select %p259, %s258, 84
        %s261 = smul.u32 128, %s260
        %v262 = vld [vmem:[%s210] sm:$0xff]
        %v263 = vld [vmem:[%s210 + $0x8] sm:$0xff]
        %v264 = vld [vmem:[%s210 + $0x10] sm:$0xff]
        %v265 = vld [vmem:[%s210 + $0x18] sm:$0xff]
        %v266 = vld [vmem:[%s210 + $0x20] sm:$0xff]
        %v267 = vld [vmem:[%s210 + $0x28] sm:$0xff]
        %v268 = vld [vmem:[%s210 + $0x30] sm:$0xff]
        %v269 = vld [vmem:[%s210 + $0x38] sm:$0xff]
        %v270 = vld [vmem:[%s210 + $0x40] sm:$0xff]
        %v271 = vld [vmem:[%s210 + $0x48] sm:$0xff]
        %v272 = vld [vmem:[%s210 + $0x50] sm:$0xff]
        %v273 = vld [vmem:[%s210 + $0x58] sm:$0xff]
        %v274 = vld [vmem:[%s210 + $0x60] sm:$0xff]
        %v275 = vld [vmem:[%s210 + $0x68] sm:$0xff]
        %v276 = vld [vmem:[%s210 + $0x70] sm:$0xff]
        %v277 = vld [vmem:[%s210 + $0x78] sm:$0xff]
        %v278 = vld [vmem:[%s210 + $0x80] sm:$0xff]
        %v279 = vld [vmem:[%s210 + $0x88] sm:$0xff]
        %v280 = vld [vmem:[%s210 + $0x90] sm:$0xff]
        %v281 = vld [vmem:[%s210 + $0x98] sm:$0xff]
        %v282 = vld [vmem:[%s210 + $0xa0] sm:$0xff]
        %v283 = vld [vmem:[%s210 + $0xa8] sm:$0xff]
        %v284 = vld [vmem:[%s210 + $0xb0] sm:$0xff]
        %v285 = vld [vmem:[%s210 + $0xb8] sm:$0xff]
        %v286 = vld [vmem:[%s210 + $0xc0] sm:$0xff]
        %v287 = vld [vmem:[%s210 + $0xc8] sm:$0xff]
        %v288 = vld [vmem:[%s210 + $0xd0] sm:$0xff]
        %v289 = vld [vmem:[%s210 + $0xd8] sm:$0xff]
        %v290 = vld [vmem:[%s210 + $0xe0] sm:$0xff]
        %v291 = vld [vmem:[%s210 + $0xe8] sm:$0xff]
        %v292 = vld [vmem:[%s210 + $0xf0] sm:$0xff]
        %v293 = vld [vmem:[%s210 + $0xf8] sm:$0xff]
        %v294 = vld [vmem:[%s210 + $0x100] sm:$0xff]
        %v295 = vld [vmem:[%s210 + $0x108] sm:$0xff]
        %v296 = vld [vmem:[%s210 + $0x110] sm:$0xff]
        %v297 = vld [vmem:[%s210 + $0x118] sm:$0xff]
        %v298 = vld [vmem:[%s210 + $0x120] sm:$0xff]
        %v299 = vld [vmem:[%s210 + $0x128] sm:$0xff]
        %v300 = vld [vmem:[%s210 + $0x130] sm:$0xff]
        %v301 = vld [vmem:[%s210 + $0x138] sm:$0xff]
        %v302 = vld [vmem:[%s210 + $0x140] sm:$0xff]
        %v303 = vld [vmem:[%s210 + $0x148] sm:$0xff]
        %v304 = vld [vmem:[%s210 + $0x150] sm:$0xff]
        %v305 = vld [vmem:[%s210 + $0x158] sm:$0xff]
        %v306 = vld [vmem:[%s210 + $0x160] sm:$0xff]
        %v307 = vld [vmem:[%s210 + $0x168] sm:$0xff]
        %v308 = vld [vmem:[%s210 + $0x170] sm:$0xff]
        %v309 = vld [vmem:[%s210 + $0x178] sm:$0xff]
        %v310 = vld [vmem:[%s210 + $0x180] sm:$0xff]
        %v311 = vld [vmem:[%s210 + $0x188] sm:$0xff]
        %v312 = vld [vmem:[%s210 + $0x190] sm:$0xff]
        %v313 = vld [vmem:[%s210 + $0x198] sm:$0xff]
        %v314 = vld [vmem:[%s210 + $0x1a0] sm:$0xff]
        %v315 = vld [vmem:[%s210 + $0x1a8] sm:$0xff]
        %v316 = vld [vmem:[%s210 + $0x1b0] sm:$0xff]
        %v317 = vld [vmem:[%s210 + $0x1b8] sm:$0xff]
        %v318 = vld [vmem:[%s210 + $0x1c0] sm:$0xff]
        %v319 = vld [vmem:[%s210 + $0x1c8] sm:$0xff]
        %v320 = vld [vmem:[%s210 + $0x1d0] sm:$0xff]
        %v321 = vld [vmem:[%s210 + $0x1d8] sm:$0xff]
        %v322 = vld [vmem:[%s210 + $0x1e0] sm:$0xff]
        %v323 = vld [vmem:[%s210 + $0x1e8] sm:$0xff]
        %v324 = vld [vmem:[%s210 + $0x1f0] sm:$0xff]
        %v325 = vld [vmem:[%s210 + $0x1f8] sm:$0xff]
        %v326 = vld [vmem:[%s210 + $0x200] sm:$0xff]
        %v327 = vld [vmem:[%s210 + $0x208] sm:$0xff]
        %v328 = vld [vmem:[%s210 + $0x210] sm:$0xff]
        %v329 = vld [vmem:[%s210 + $0x218] sm:$0xff]
        %v330 = vld [vmem:[%s210 + $0x220] sm:$0xff]
        %v331 = vld [vmem:[%s210 + $0x228] sm:$0xff]
        %v332 = vld [vmem:[%s210 + $0x230] sm:$0xff]
        %v333 = vld [vmem:[%s210 + $0x238] sm:$0xff]
        %v334 = vld [vmem:[%s210 + $0x240] sm:$0xff]
        %v335 = vld [vmem:[%s210 + $0x248] sm:$0xff]
        %v336 = vld [vmem:[%s210 + $0x250] sm:$0xff]
        %v337 = vld [vmem:[%s210 + $0x258] sm:$0xff]
        %v338 = vld [vmem:[%s210 + $0x260] sm:$0xff]
        %v339 = vld [vmem:[%s210 + $0x268] sm:$0xff]
        %v340 = vld [vmem:[%s210 + $0x270] sm:$0xff]
        %v341 = vld [vmem:[%s210 + $0x278] sm:$0xff]
        %v342 = vld [vmem:[%s210 + $0x280] sm:$0xff]
        %v343 = vld [vmem:[%s210 + $0x288] sm:$0xff]
        %v344 = vld [vmem:[%s210 + $0x290] sm:$0xff]
        %v345 = vld [vmem:[%s210 + $0x298] sm:$0xff]
        %v346 = vld [vmem:[%s219] sm:$0xff]
        %v347 = vld [vmem:[%s219 + $0x8] sm:$0xff]
        %v348 = vld [vmem:[%s219 + $0x10] sm:$0xff]
        %v349 = vld [vmem:[%s219 + $0x18] sm:$0xff]
        %v350 = vld [vmem:[%s219 + $0x20] sm:$0xff]
        %v351 = vld [vmem:[%s219 + $0x28] sm:$0xff]
        %v352 = vld [vmem:[%s219 + $0x30] sm:$0xff]
        %v353 = vld [vmem:[%s219 + $0x38] sm:$0xff]
        %v354 = vld [vmem:[%s219 + $0x40] sm:$0xff]
        %v355 = vld [vmem:[%s219 + $0x48] sm:$0xff]
        %v356 = vld [vmem:[%s219 + $0x50] sm:$0xff]
        %v357 = vld [vmem:[%s219 + $0x58] sm:$0xff]
        %v358 = vld [vmem:[%s219 + $0x60] sm:$0xff]
        %v359 = vld [vmem:[%s219 + $0x68] sm:$0xff]
        %v360 = vld [vmem:[%s219 + $0x70] sm:$0xff]
        %v361 = vld [vmem:[%s219 + $0x78] sm:$0xff]
        %v362 = vld [vmem:[%s219 + $0x80] sm:$0xff]
        %v363 = vld [vmem:[%s219 + $0x88] sm:$0xff]
        %v364 = vld [vmem:[%s219 + $0x90] sm:$0xff]
        %v365 = vld [vmem:[%s219 + $0x98] sm:$0xff]
        %v366 = vld [vmem:[%s219 + $0xa0] sm:$0xff]
        %v367 = vld [vmem:[%s219 + $0xa8] sm:$0xff]
        %v368 = vld [vmem:[%s219 + $0xb0] sm:$0xff]
        %v369 = vld [vmem:[%s219 + $0xb8] sm:$0xff]
        %v370 = vld [vmem:[%s219 + $0xc0] sm:$0xff]
        %v371 = vld [vmem:[%s219 + $0xc8] sm:$0xff]
        %v372 = vld [vmem:[%s219 + $0xd0] sm:$0xff]
        %v373 = vld [vmem:[%s219 + $0xd8] sm:$0xff]
        %v374 = vld [vmem:[%s219 + $0xe0] sm:$0xff]
        %v375 = vld [vmem:[%s219 + $0xe8] sm:$0xff]
        %v376 = vld [vmem:[%s219 + $0xf0] sm:$0xff]
        %v377 = vld [vmem:[%s219 + $0xf8] sm:$0xff]
        %v378 = vld [vmem:[%s219 + $0x100] sm:$0xff]
        %v379 = vld [vmem:[%s219 + $0x108] sm:$0xff]
        %v380 = vld [vmem:[%s219 + $0x110] sm:$0xff]
        %v381 = vld [vmem:[%s219 + $0x118] sm:$0xff]
        %v382 = vld [vmem:[%s219 + $0x120] sm:$0xff]
        %v383 = vld [vmem:[%s219 + $0x128] sm:$0xff]
        %v384 = vld [vmem:[%s219 + $0x130] sm:$0xff]
        %v385 = vld [vmem:[%s219 + $0x138] sm:$0xff]
        %v386 = vld [vmem:[%s219 + $0x140] sm:$0xff]
        %v387 = vld [vmem:[%s219 + $0x148] sm:$0xff]
        %v388 = vld [vmem:[%s219 + $0x150] sm:$0xff]
        %v389 = vld [vmem:[%s219 + $0x158] sm:$0xff]
        %v390 = vld [vmem:[%s219 + $0x160] sm:$0xff]
        %v391 = vld [vmem:[%s219 + $0x168] sm:$0xff]
        %v392 = vld [vmem:[%s219 + $0x170] sm:$0xff]
        %v393 = vld [vmem:[%s219 + $0x178] sm:$0xff]
        %v394 = vld [vmem:[%s219 + $0x180] sm:$0xff]
        %v395 = vld [vmem:[%s219 + $0x188] sm:$0xff]
        %v396 = vld [vmem:[%s219 + $0x190] sm:$0xff]
        %v397 = vld [vmem:[%s219 + $0x198] sm:$0xff]
        %v398 = vld [vmem:[%s219 + $0x1a0] sm:$0xff]
        %v399 = vld [vmem:[%s219 + $0x1a8] sm:$0xff]
        %v400 = vld [vmem:[%s219 + $0x1b0] sm:$0xff]
        %v401 = vld [vmem:[%s219 + $0x1b8] sm:$0xff]
        %v402 = vld [vmem:[%s219 + $0x1c0] sm:$0xff]
        %v403 = vld [vmem:[%s219 + $0x1c8] sm:$0xff]
        %v404 = vld [vmem:[%s219 + $0x1d0] sm:$0xff]
        %v405 = vld [vmem:[%s219 + $0x1d8] sm:$0xff]
        %v406 = vld [vmem:[%s219 + $0x1e0] sm:$0xff]
        %v407 = vld [vmem:[%s219 + $0x1e8] sm:$0xff]
        %v408 = vld [vmem:[%s219 + $0x1f0] sm:$0xff]
        %v409 = vld [vmem:[%s219 + $0x1f8] sm:$0xff]
        %v410 = vld [vmem:[%s219 + $0x200] sm:$0xff]
        %v411 = vld [vmem:[%s219 + $0x208] sm:$0xff]
        %v412 = vld [vmem:[%s219 + $0x210] sm:$0xff]
        %v413 = vld [vmem:[%s219 + $0x218] sm:$0xff]
        %v414 = vld [vmem:[%s219 + $0x220] sm:$0xff]
        %v415 = vld [vmem:[%s219 + $0x228] sm:$0xff]
        %v416 = vld [vmem:[%s219 + $0x230] sm:$0xff]
        %v417 = vld [vmem:[%s219 + $0x238] sm:$0xff]
        %v418 = vld [vmem:[%s219 + $0x240] sm:$0xff]
        %v419 = vld [vmem:[%s219 + $0x248] sm:$0xff]
        %v420 = vld [vmem:[%s219 + $0x250] sm:$0xff]
        %v421 = vld [vmem:[%s219 + $0x258] sm:$0xff]
        %v422 = vld [vmem:[%s219 + $0x260] sm:$0xff]
        %v423 = vld [vmem:[%s219 + $0x268] sm:$0xff]
        %v424 = vld [vmem:[%s219 + $0x270] sm:$0xff]
        %v425 = vld [vmem:[%s219 + $0x278] sm:$0xff]
        %v426 = vld [vmem:[%s219 + $0x280] sm:$0xff]
        %v427 = vld [vmem:[%s219 + $0x288] sm:$0xff]
        %v428 = vld [vmem:[%s219 + $0x290] sm:$0xff]
        %v429 = vld [vmem:[%s219 + $0x298] sm:$0xff]
        %v430 = vsub.f32 %v346, %v262
        %v431 = vsub.f32 %v347, %v263
        %v432 = vsub.f32 %v348, %v264
        %v433 = vsub.f32 %v349, %v265
        %v434 = vsub.f32 %v350, %v266
        %v435 = vsub.f32 %v351, %v267
        %v436 = vsub.f32 %v352, %v268
        %v437 = vsub.f32 %v353, %v269
        %v438 = vsub.f32 %v354, %v270
        %v439 = vsub.f32 %v355, %v271
        %v440 = vsub.f32 %v356, %v272
        %v441 = vsub.f32 %v357, %v273
        %v442 = vsub.f32 %v358, %v274
        %v443 = vsub.f32 %v359, %v275
        %v444 = vsub.f32 %v360, %v276
        %v445 = vsub.f32 %v361, %v277
        %v446 = vsub.f32 %v362, %v278
        %v447 = vsub.f32 %v363, %v279
        %v448 = vsub.f32 %v364, %v280
        %v449 = vsub.f32 %v365, %v281
        %v450 = vsub.f32 %v366, %v282
        %v451 = vsub.f32 %v367, %v283
        %v452 = vsub.f32 %v368, %v284
        %v453 = vsub.f32 %v369, %v285
        %v454 = vsub.f32 %v370, %v286
        %v455 = vsub.f32 %v371, %v287
        %v456 = vsub.f32 %v372, %v288
        %v457 = vsub.f32 %v373, %v289
        %v458 = vsub.f32 %v374, %v290
        %v459 = vsub.f32 %v375, %v291
        %v460 = vsub.f32 %v376, %v292
        %v461 = vsub.f32 %v377, %v293
        %v462 = vsub.f32 %v378, %v294
        %v463 = vsub.f32 %v379, %v295
        %v464 = vsub.f32 %v380, %v296
        %v465 = vsub.f32 %v381, %v297
        %v466 = vsub.f32 %v382, %v298
        %v467 = vsub.f32 %v383, %v299
        %v468 = vsub.f32 %v384, %v300
        %v469 = vsub.f32 %v385, %v301
        %v470 = vsub.f32 %v386, %v302
        %v471 = vsub.f32 %v387, %v303
        %v472 = vsub.f32 %v388, %v304
        %v473 = vsub.f32 %v389, %v305
        %v474 = vsub.f32 %v390, %v306
        %v475 = vsub.f32 %v391, %v307
        %v476 = vsub.f32 %v392, %v308
        %v477 = vsub.f32 %v393, %v309
        %v478 = vsub.f32 %v394, %v310
        %v479 = vsub.f32 %v395, %v311
        %v480 = vsub.f32 %v396, %v312
        %v481 = vsub.f32 %v397, %v313
        %v482 = vsub.f32 %v398, %v314
        %v483 = vsub.f32 %v399, %v315
        %v484 = vsub.f32 %v400, %v316
        %v485 = vsub.f32 %v401, %v317
        %v486 = vsub.f32 %v402, %v318
        %v487 = vsub.f32 %v403, %v319
        %v488 = vsub.f32 %v404, %v320
        %v489 = vsub.f32 %v405, %v321
        %v490 = vsub.f32 %v406, %v322
        %v491 = vsub.f32 %v407, %v323
        %v492 = vsub.f32 %v408, %v324
        %v493 = vsub.f32 %v409, %v325
        %v494 = vsub.f32 %v410, %v326
        %v495 = vsub.f32 %v411, %v327
        %v496 = vsub.f32 %v412, %v328
        %v497 = vsub.f32 %v413, %v329
        %v498 = vsub.f32 %v414, %v330
        %v499 = vsub.f32 %v415, %v331
        %v500 = vsub.f32 %v416, %v332
        %v501 = vsub.f32 %v417, %v333
        %v502 = vsub.f32 %v418, %v334
        %v503 = vsub.f32 %v419, %v335
        %v504 = vsub.f32 %v420, %v336
        %v505 = vsub.f32 %v421, %v337
        %v506 = vsub.f32 %v422, %v338
        %v507 = vsub.f32 %v423, %v339
        %v508 = vsub.f32 %v424, %v340
        %v509 = vsub.f32 %v425, %v341
        %v510 = vsub.f32 %v426, %v342
        %v511 = vsub.f32 %v427, %v343
        %v512 = vsub.f32 %v428, %v344
        %v513 = vsub.f32 %v429, %v345
        %v514 = vmul.f32 %v430, %v430
        %v515 = vmul.f32 %v431, %v431
        %v516 = vmul.f32 %v432, %v432
        %v517 = vmul.f32 %v433, %v433
        %v518 = vmul.f32 %v434, %v434
        %v519 = vmul.f32 %v435, %v435
        %v520 = vmul.f32 %v436, %v436
        %v521 = vmul.f32 %v437, %v437
        %v522 = vmul.f32 %v438, %v438
        %v523 = vmul.f32 %v439, %v439
        %v524 = vmul.f32 %v440, %v440
        %v525 = vmul.f32 %v441, %v441
        %v526 = vmul.f32 %v442, %v442
        %v527 = vmul.f32 %v443, %v443
        %v528 = vmul.f32 %v444, %v444
        %v529 = vmul.f32 %v445, %v445
        %v530 = vmul.f32 %v446, %v446
        %v531 = vmul.f32 %v447, %v447
        %v532 = vmul.f32 %v448, %v448
        %v533 = vmul.f32 %v449, %v449
        %v534 = vmul.f32 %v450, %v450
        %v535 = vmul.f32 %v451, %v451
        %v536 = vmul.f32 %v452, %v452
        %v537 = vmul.f32 %v453, %v453
        %v538 = vmul.f32 %v454, %v454
        %v539 = vmul.f32 %v455, %v455
        %v540 = vmul.f32 %v456, %v456
        %v541 = vmul.f32 %v457, %v457
        %v542 = vmul.f32 %v458, %v458
        %v543 = vmul.f32 %v459, %v459
        %v544 = vmul.f32 %v460, %v460
        %v545 = vmul.f32 %v461, %v461
        %v546 = vmul.f32 %v462, %v462
        %v547 = vmul.f32 %v463, %v463
        %v548 = vmul.f32 %v464, %v464
        %v549 = vmul.f32 %v465, %v465
        %v550 = vmul.f32 %v466, %v466
        %v551 = vmul.f32 %v467, %v467
        %v552 = vmul.f32 %v468, %v468
        %v553 = vmul.f32 %v469, %v469
        %v554 = vmul.f32 %v470, %v470
        %v555 = vmul.f32 %v471, %v471
        %v556 = vmul.f32 %v472, %v472
        %v557 = vmul.f32 %v473, %v473
        %v558 = vmul.f32 %v474, %v474
        %v559 = vmul.f32 %v475, %v475
        %v560 = vmul.f32 %v476, %v476
        %v561 = vmul.f32 %v477, %v477
        %v562 = vmul.f32 %v478, %v478
        %v563 = vmul.f32 %v479, %v479
        %v564 = vmul.f32 %v480, %v480
        %v565 = vmul.f32 %v481, %v481
        %v566 = vmul.f32 %v482, %v482
        %v567 = vmul.f32 %v483, %v483
        %v568 = vmul.f32 %v484, %v484
        %v569 = vmul.f32 %v485, %v485
        %v570 = vmul.f32 %v486, %v486
        %v571 = vmul.f32 %v487, %v487
        %v572 = vmul.f32 %v488, %v488
        %v573 = vmul.f32 %v489, %v489
        %v574 = vmul.f32 %v490, %v490
        %v575 = vmul.f32 %v491, %v491
        %v576 = vmul.f32 %v492, %v492
        %v577 = vmul.f32 %v493, %v493
        %v578 = vmul.f32 %v494, %v494
        %v579 = vmul.f32 %v495, %v495
        %v580 = vmul.f32 %v496, %v496
        %v581 = vmul.f32 %v497, %v497
        %v582 = vmul.f32 %v498, %v498
        %v583 = vmul.f32 %v499, %v499
        %v584 = vmul.f32 %v500, %v500
        %v585 = vmul.f32 %v501, %v501
        %v586 = vmul.f32 %v502, %v502
        %v587 = vmul.f32 %v503, %v503
        %v588 = vmul.f32 %v504, %v504
        %v589 = vmul.f32 %v505, %v505
        %v590 = vmul.f32 %v506, %v506
        %v591 = vmul.f32 %v507, %v507
        %v592 = vmul.f32 %v508, %v508
        %v593 = vmul.f32 %v509, %v509
        %v594 = vmul.f32 %v510, %v510
        %v595 = vmul.f32 %v511, %v511
        %v596 = vmul.f32 %v512, %v512
        %v597 = vmul.f32 %v513, %v513
        %v598 = vmul.f32 %v514, -0.5
        %v599 = vmul.f32 %v515, -0.5
        %v600 = vmul.f32 %v516, -0.5
        %v601 = vmul.f32 %v517, -0.5
        %v602 = vmul.f32 %v518, -0.5
        %v603 = vmul.f32 %v519, -0.5
        %v604 = vmul.f32 %v520, -0.5
        %v605 = vmul.f32 %v521, -0.5
        %v606 = vmul.f32 %v522, -0.5
        %v607 = vmul.f32 %v523, -0.5
        %v608 = vmul.f32 %v524, -0.5
        %v609 = vmul.f32 %v525, -0.5
        %v610 = vmul.f32 %v526, -0.5
        %v611 = vmul.f32 %v527, -0.5
        %v612 = vmul.f32 %v528, -0.5
        %v613 = vmul.f32 %v529, -0.5
        %v614 = vmul.f32 %v530, -0.5
        %v615 = vmul.f32 %v531, -0.5
        %v616 = vmul.f32 %v532, -0.5
        %v617 = vmul.f32 %v533, -0.5
        %v618 = vmul.f32 %v534, -0.5
        %v619 = vmul.f32 %v535, -0.5
        %v620 = vmul.f32 %v536, -0.5
        %v621 = vmul.f32 %v537, -0.5
        %v622 = vmul.f32 %v538, -0.5
        %v623 = vmul.f32 %v539, -0.5
        %v624 = vmul.f32 %v540, -0.5
        %v625 = vmul.f32 %v541, -0.5
        %v626 = vmul.f32 %v542, -0.5
        %v627 = vmul.f32 %v543, -0.5
        %v628 = vmul.f32 %v544, -0.5
        %v629 = vmul.f32 %v545, -0.5
        %v630 = vmul.f32 %v546, -0.5
        %v631 = vmul.f32 %v547, -0.5
        %v632 = vmul.f32 %v548, -0.5
        %v633 = vmul.f32 %v549, -0.5
        %v634 = vmul.f32 %v550, -0.5
        %v635 = vmul.f32 %v551, -0.5
        %v636 = vmul.f32 %v552, -0.5
        %v637 = vmul.f32 %v553, -0.5
        %v638 = vmul.f32 %v554, -0.5
        %v639 = vmul.f32 %v555, -0.5
        %v640 = vmul.f32 %v556, -0.5
        %v641 = vmul.f32 %v557, -0.5
        %v642 = vmul.f32 %v558, -0.5
        %v643 = vmul.f32 %v559, -0.5
        %v644 = vmul.f32 %v560, -0.5
        %v645 = vmul.f32 %v561, -0.5
        %v646 = vmul.f32 %v562, -0.5
        %v647 = vmul.f32 %v563, -0.5
        %v648 = vmul.f32 %v564, -0.5
        %v649 = vmul.f32 %v565, -0.5
        %v650 = vmul.f32 %v566, -0.5
        %v651 = vmul.f32 %v567, -0.5
        %v652 = vmul.f32 %v568, -0.5
        %v653 = vmul.f32 %v569, -0.5
        %v654 = vmul.f32 %v570, -0.5
        %v655 = vmul.f32 %v571, -0.5
        %v656 = vmul.f32 %v572, -0.5
        %v657 = vmul.f32 %v573, -0.5
        %v658 = vmul.f32 %v574, -0.5
        %v659 = vmul.f32 %v575, -0.5
        %v660 = vmul.f32 %v576, -0.5
        %v661 = vmul.f32 %v577, -0.5
        %v662 = vmul.f32 %v578, -0.5
        %v663 = vmul.f32 %v579, -0.5
        %v664 = vmul.f32 %v580, -0.5
        %v665 = vmul.f32 %v581, -0.5
        %v666 = vmul.f32 %v582, -0.5
        %v667 = vmul.f32 %v583, -0.5
        %v668 = vmul.f32 %v584, -0.5
        %v669 = vmul.f32 %v585, -0.5
        %v670 = vmul.f32 %v586, -0.5
        %v671 = vmul.f32 %v587, -0.5
        %v672 = vmul.f32 %v588, -0.5
        %v673 = vmul.f32 %v589, -0.5
        %v674 = vmul.f32 %v590, -0.5
        %v675 = vmul.f32 %v591, -0.5
        %v676 = vmul.f32 %v592, -0.5
        %v677 = vmul.f32 %v593, -0.5
        %v678 = vmul.f32 %v594, -0.5
        %v679 = vmul.f32 %v595, -0.5
        %v680 = vmul.f32 %v596, -0.5
        %v681 = vmul.f32 %v597, -0.5
        %v682 = vsub.f32 %v598, 0.9189385
        %v683 = vsub.f32 %v599, 0.9189385
        %v684 = vsub.f32 %v600, 0.9189385
        %v685 = vsub.f32 %v601, 0.9189385
        %v686 = vsub.f32 %v602, 0.9189385
        %v687 = vsub.f32 %v603, 0.9189385
        %v688 = vsub.f32 %v604, 0.9189385
        %v689 = vsub.f32 %v605, 0.9189385
        %v690 = vsub.f32 %v606, 0.9189385
        %v691 = vsub.f32 %v607, 0.9189385
        %v692 = vsub.f32 %v608, 0.9189385
        %v693 = vsub.f32 %v609, 0.9189385
        %v694 = vsub.f32 %v610, 0.9189385
        %v695 = vsub.f32 %v611, 0.9189385
        %v696 = vsub.f32 %v612, 0.9189385
        %v697 = vsub.f32 %v613, 0.9189385
        %v698 = vsub.f32 %v614, 0.9189385
        %v699 = vsub.f32 %v615, 0.9189385
        %v700 = vsub.f32 %v616, 0.9189385
        %v701 = vsub.f32 %v617, 0.9189385
        %v702 = vsub.f32 %v618, 0.9189385
        %v703 = vsub.f32 %v619, 0.9189385
        %v704 = vsub.f32 %v620, 0.9189385
        %v705 = vsub.f32 %v621, 0.9189385
        %v706 = vsub.f32 %v622, 0.9189385
        %v707 = vsub.f32 %v623, 0.9189385
        %v708 = vsub.f32 %v624, 0.9189385
        %v709 = vsub.f32 %v625, 0.9189385
        %v710 = vsub.f32 %v626, 0.9189385
        %v711 = vsub.f32 %v627, 0.9189385
        %v712 = vsub.f32 %v628, 0.9189385
        %v713 = vsub.f32 %v629, 0.9189385
        %v714 = vsub.f32 %v630, 0.9189385
        %v715 = vsub.f32 %v631, 0.9189385
        %v716 = vsub.f32 %v632, 0.9189385
        %v717 = vsub.f32 %v633, 0.9189385
        %v718 = vsub.f32 %v634, 0.9189385
        %v719 = vsub.f32 %v635, 0.9189385
        %v720 = vsub.f32 %v636, 0.9189385
        %v721 = vsub.f32 %v637, 0.9189385
        %v722 = vsub.f32 %v638, 0.9189385
        %v723 = vsub.f32 %v639, 0.9189385
        %v724 = vsub.f32 %v640, 0.9189385
        %v725 = vsub.f32 %v641, 0.9189385
        %v726 = vsub.f32 %v642, 0.9189385
        %v727 = vsub.f32 %v643, 0.9189385
        %v728 = vsub.f32 %v644, 0.9189385
        %v729 = vsub.f32 %v645, 0.9189385
        %v730 = vsub.f32 %v646, 0.9189385
        %v731 = vsub.f32 %v647, 0.9189385
        %v732 = vsub.f32 %v648, 0.9189385
        %v733 = vsub.f32 %v649, 0.9189385
        %v734 = vsub.f32 %v650, 0.9189385
        %v735 = vsub.f32 %v651, 0.9189385
        %v736 = vsub.f32 %v652, 0.9189385
        %v737 = vsub.f32 %v653, 0.9189385
        %v738 = vsub.f32 %v654, 0.9189385
        %v739 = vsub.f32 %v655, 0.9189385
        %v740 = vsub.f32 %v656, 0.9189385
        %v741 = vsub.f32 %v657, 0.9189385
        %v742 = vsub.f32 %v658, 0.9189385
        %v743 = vsub.f32 %v659, 0.9189385
        %v744 = vsub.f32 %v660, 0.9189385
        %v745 = vsub.f32 %v661, 0.9189385
        %v746 = vsub.f32 %v662, 0.9189385
        %v747 = vsub.f32 %v663, 0.9189385
        %v748 = vsub.f32 %v664, 0.9189385
        %v749 = vsub.f32 %v665, 0.9189385
        %v750 = vsub.f32 %v666, 0.9189385
        %v751 = vsub.f32 %v667, 0.9189385
        %v752 = vsub.f32 %v668, 0.9189385
        %v753 = vsub.f32 %v669, 0.9189385
        %v754 = vsub.f32 %v670, 0.9189385
        %v755 = vsub.f32 %v671, 0.9189385
        %v756 = vsub.f32 %v672, 0.9189385
        %v757 = vsub.f32 %v673, 0.9189385
        %v758 = vsub.f32 %v674, 0.9189385
        %v759 = vsub.f32 %v675, 0.9189385
        %v760 = vsub.f32 %v676, 0.9189385
        %v761 = vsub.f32 %v677, 0.9189385
        %v762 = vsub.f32 %v678, 0.9189385
        %v763 = vsub.f32 %v679, 0.9189385
        %v764 = vsub.f32 %v680, 0.9189385
        %v765 = vsub.f32 %v681, 0.9189385
        %p766 = scmp.eq.s32.totalorder %s27, 3
        %p767 = scmp.ne.s32.totalorder %s27, 3
        // Predicated region
        $region37: #{tpu_custom_call.1} parent=27 // pred_check
          %p768 = pneg %p767
        $region38: #{tpu_custom_call.1} parent=27 // pred_check_branch
          %770 = sbr.rel (%p768) target = $region40
        $region39: #{tpu_custom_call.1} parent=27 // pred_region
          %v771 = vadd.f32 %v682, %v683
          %v772 = vadd.f32 %v771, %v684
          %v773 = vadd.f32 %v772, %v685
          %v774 = vadd.f32 %v773, %v686
          %v775 = vadd.f32 %v774, %v687
          %v776 = vadd.f32 %v775, %v688
          %v777 = vadd.f32 %v776, %v689
          %v778 = vadd.f32 %v777, %v690
          %v779 = vadd.f32 %v778, %v691
          %v780 = vadd.f32 %v779, %v692
          %v781 = vadd.f32 %v780, %v693
          %v782 = vadd.f32 %v781, %v694
          %v783 = vadd.f32 %v782, %v695
          %v784 = vadd.f32 %v783, %v696
          %v785 = vadd.f32 %v784, %v697
          %v786 = vadd.f32 %v785, %v698
          %v787 = vadd.f32 %v786, %v699
          %v788 = vadd.f32 %v787, %v700
          %v789 = vadd.f32 %v788, %v701
          %v790 = vadd.f32 %v789, %v702
          %v791 = vadd.f32 %v790, %v703
          %v792 = vadd.f32 %v791, %v704
          %v793 = vadd.f32 %v792, %v705
          %v794 = vadd.f32 %v793, %v706
          %v795 = vadd.f32 %v794, %v707
          %v796 = vadd.f32 %v795, %v708
          %v797 = vadd.f32 %v796, %v709
          %v798 = vadd.f32 %v797, %v710
          %v799 = vadd.f32 %v798, %v711
          %v800 = vadd.f32 %v799, %v712
          %v801 = vadd.f32 %v800, %v713
          %v802 = vadd.f32 %v801, %v714
          %v803 = vadd.f32 %v802, %v715
          %v804 = vadd.f32 %v803, %v716
          %v805 = vadd.f32 %v804, %v717
          %v806 = vadd.f32 %v805, %v718
          %v807 = vadd.f32 %v806, %v719
          %v808 = vadd.f32 %v807, %v720
          %v809 = vadd.f32 %v808, %v721
          %v810 = vadd.f32 %v809, %v722
          %v811 = vadd.f32 %v810, %v723
          %v812 = vadd.f32 %v811, %v724
          %v813 = vadd.f32 %v812, %v725
          %v814 = vadd.f32 %v813, %v726
          %v815 = vadd.f32 %v814, %v727
          %v816 = vadd.f32 %v815, %v728
          %v817 = vadd.f32 %v816, %v729
          %v818 = vadd.f32 %v817, %v730
          %v819 = vadd.f32 %v818, %v731
          %v820 = vadd.f32 %v819, %v732
          %v821 = vadd.f32 %v820, %v733
          %v822 = vadd.f32 %v821, %v734
          %v823 = vadd.f32 %v822, %v735
          %v824 = vadd.f32 %v823, %v736
          %v825 = vadd.f32 %v824, %v737
          %v826 = vadd.f32 %v825, %v738
          %v827 = vadd.f32 %v826, %v739
          %v828 = vadd.f32 %v827, %v740
          %v829 = vadd.f32 %v828, %v741
          %v830 = vadd.f32 %v829, %v742
          %v831 = vadd.f32 %v830, %v743
          %v832 = vadd.f32 %v831, %v744
          %v833 = vadd.f32 %v832, %v745
          %v834 = vadd.f32 %v833, %v746
          %v835 = vadd.f32 %v834, %v747
          %v836 = vadd.f32 %v835, %v748
          %v837 = vadd.f32 %v836, %v749
          %v838 = vadd.f32 %v837, %v750
          %v839 = vadd.f32 %v838, %v751
          %v840 = vadd.f32 %v839, %v752
          %v841 = vadd.f32 %v840, %v753
          %v842 = vadd.f32 %v841, %v754
          %v843 = vadd.f32 %v842, %v755
          %v844 = vadd.f32 %v843, %v756
          %v845 = vadd.f32 %v844, %v757
          %v846 = vadd.f32 %v845, %v758
          %v847 = vadd.f32 %v846, %v759
          %v848 = vadd.f32 %v847, %v760
          %v849 = vadd.f32 %v848, %v761
          %v850 = vadd.f32 %v849, %v762
          %v851 = vadd.f32 %v850, %v763
          %v852 = vadd.f32 %v851, %v764
          %v853 = vadd.f32 %v852, %v765
          %854 = vst [vmem:[%s244] sm:$0xff] %v853
          %v855 = vadd.f32 %v514, %v515
          %v856 = vadd.f32 %v855, %v516
          %v857 = vadd.f32 %v856, %v517
          %v858 = vadd.f32 %v857, %v518
          %v859 = vadd.f32 %v858, %v519
          %v860 = vadd.f32 %v859, %v520
          %v861 = vadd.f32 %v860, %v521
          %v862 = vadd.f32 %v861, %v522
          %v863 = vadd.f32 %v862, %v523
          %v864 = vadd.f32 %v863, %v524
          %v865 = vadd.f32 %v864, %v525
          %v866 = vadd.f32 %v865, %v526
          %v867 = vadd.f32 %v866, %v527
          %v868 = vadd.f32 %v867, %v528
          %v869 = vadd.f32 %v868, %v529
          %v870 = vadd.f32 %v869, %v530
          %v871 = vadd.f32 %v870, %v531
          %v872 = vadd.f32 %v871, %v532
          %v873 = vadd.f32 %v872, %v533
          %v874 = vadd.f32 %v873, %v534
          %v875 = vadd.f32 %v874, %v535
          %v876 = vadd.f32 %v875, %v536
          %v877 = vadd.f32 %v876, %v537
          %v878 = vadd.f32 %v877, %v538
          %v879 = vadd.f32 %v878, %v539
          %v880 = vadd.f32 %v879, %v540
          %v881 = vadd.f32 %v880, %v541
          %v882 = vadd.f32 %v881, %v542
          %v883 = vadd.f32 %v882, %v543
          %v884 = vadd.f32 %v883, %v544
          %v885 = vadd.f32 %v884, %v545
          %v886 = vadd.f32 %v885, %v546
          %v887 = vadd.f32 %v886, %v547
          %v888 = vadd.f32 %v887, %v548
          %v889 = vadd.f32 %v888, %v549
          %v890 = vadd.f32 %v889, %v550
          %v891 = vadd.f32 %v890, %v551
          %v892 = vadd.f32 %v891, %v552
          %v893 = vadd.f32 %v892, %v553
          %v894 = vadd.f32 %v893, %v554
          %v895 = vadd.f32 %v894, %v555
          %v896 = vadd.f32 %v895, %v556
          %v897 = vadd.f32 %v896, %v557
          %v898 = vadd.f32 %v897, %v558
          %v899 = vadd.f32 %v898, %v559
          %v900 = vadd.f32 %v899, %v560
          %v901 = vadd.f32 %v900, %v561
          %v902 = vadd.f32 %v901, %v562
          %v903 = vadd.f32 %v902, %v563
          %v904 = vadd.f32 %v903, %v564
          %v905 = vadd.f32 %v904, %v565
          %v906 = vadd.f32 %v905, %v566
          %v907 = vadd.f32 %v906, %v567
          %v908 = vadd.f32 %v907, %v568
          %v909 = vadd.f32 %v908, %v569
          %v910 = vadd.f32 %v909, %v570
          %v911 = vadd.f32 %v910, %v571
          %v912 = vadd.f32 %v911, %v572
          %v913 = vadd.f32 %v912, %v573
          %v914 = vadd.f32 %v913, %v574
          %v915 = vadd.f32 %v914, %v575
          %v916 = vadd.f32 %v915, %v576
          %v917 = vadd.f32 %v916, %v577
          %v918 = vadd.f32 %v917, %v578
          %v919 = vadd.f32 %v918, %v579
          %v920 = vadd.f32 %v919, %v580
          %v921 = vadd.f32 %v920, %v581
          %v922 = vadd.f32 %v921, %v582
          %v923 = vadd.f32 %v922, %v583
          %v924 = vadd.f32 %v923, %v584
          %v925 = vadd.f32 %v924, %v585
          %v926 = vadd.f32 %v925, %v586
          %v927 = vadd.f32 %v926, %v587
          %v928 = vadd.f32 %v927, %v588
          %v929 = vadd.f32 %v928, %v589
          %v930 = vadd.f32 %v929, %v590
          %v931 = vadd.f32 %v930, %v591
          %v932 = vadd.f32 %v931, %v592
          %v933 = vadd.f32 %v932, %v593
          %v934 = vadd.f32 %v933, %v594
          %v935 = vadd.f32 %v934, %v595
          %v936 = vadd.f32 %v935, %v596
          %v937 = vadd.f32 %v936, %v597
          %938 = vst [vmem:[%s251] sm:$0xff] %v937
        $region40: #{tpu_custom_call.1} parent=27 // pred_fallthru
          _
        // Predicated region
        $region41: #{tpu_custom_call.1} parent=27 // pred_check
          %p939 = pneg %p766
        $region42: #{tpu_custom_call.1} parent=27 // pred_check_branch
          %941 = sbr.rel (%p939) target = $region44
        $region43: #{tpu_custom_call.1} parent=27 // pred_region
          %v942 = vlaneseq
          %v943 = vshrl.u32 %v942, 7
          %v944 = vadd.s32 %v943, 8
          %v945 = vadd.s32 %v943, 16
          %v946 = vadd.s32 %v943, 24
          %v947 = vadd.s32 %v943, 32
          %v948 = vadd.s32 %v943, 40
          %v949 = vadd.s32 %v943, 48
          %v950 = vadd.s32 %v943, 56
          %v951 = vadd.s32 %v943, 64
          %v952 = vadd.s32 %v943, 72
          %v953 = vadd.s32 %v943, 80
          %v954 = vadd.s32 %v943, 88
          %v955 = vadd.s32 %v943, 96
          %v956 = vadd.s32 %v943, 104
          %v957 = vadd.s32 %v943, 112
          %v958 = vadd.s32 %v943, 120
          %v959 = vadd.s32 %v943, 128
          %v960 = vadd.s32 %v943, 136
          %v961 = vadd.s32 %v943, 144
          %v962 = vadd.s32 %v943, 152
          %v963 = vadd.s32 %v943, 160
          %v964 = vadd.s32 %v943, 168
          %v965 = vadd.s32 %v943, 176
          %v966 = vadd.s32 %v943, 184
          %v967 = vadd.s32 %v943, 192
          %v968 = vadd.s32 %v943, 200
          %v969 = vadd.s32 %v943, 208
          %v970 = vadd.s32 %v943, 216
          %v971 = vadd.s32 %v943, 224
          %v972 = vadd.s32 %v943, 232
          %v973 = vadd.s32 %v943, 240
          %v974 = vadd.s32 %v943, 248
          %v975 = vadd.s32 %v943, 256
          %v976 = vadd.s32 %v943, 264
          %v977 = vadd.s32 %v943, 272
          %v978 = vadd.s32 %v943, 280
          %v979 = vadd.s32 %v943, 288
          %v980 = vadd.s32 %v943, 296
          %v981 = vadd.s32 %v943, 304
          %v982 = vadd.s32 %v943, 312
          %v983 = vadd.s32 %v943, 320
          %v984 = vadd.s32 %v943, 328
          %v985 = vadd.s32 %v943, 336
          %v986 = vadd.s32 %v943, 344
          %v987 = vadd.s32 %v943, 352
          %v988 = vadd.s32 %v943, 360
          %v989 = vadd.s32 %v943, 368
          %v990 = vadd.s32 %v943, 376
          %v991 = vadd.s32 %v943, 384
          %v992 = vadd.s32 %v943, 392
          %v993 = vadd.s32 %v943, 400
          %v994 = vadd.s32 %v943, 408
          %v995 = vadd.s32 %v943, 416
          %v996 = vadd.s32 %v943, 424
          %v997 = vadd.s32 %v943, 432
          %v998 = vadd.s32 %v943, 440
          %v999 = vadd.s32 %v943, 448
          %v1000 = vadd.s32 %v943, 456
          %v1001 = vadd.s32 %v943, 464
          %v1002 = vadd.s32 %v943, 472
          %v1003 = vadd.s32 %v943, 480
          %v1004 = vadd.s32 %v943, 488
          %v1005 = vadd.s32 %v943, 496
          %v1006 = vadd.s32 %v943, 504
          %v1007 = vadd.s32 %v943, 512
          %v1008 = vadd.s32 %v943, 520
          %v1009 = vadd.s32 %v943, 528
          %v1010 = vadd.s32 %v943, 536
          %v1011 = vadd.s32 %v943, 544
          %v1012 = vadd.s32 %v943, 552
          %v1013 = vadd.s32 %v943, 560
          %v1014 = vadd.s32 %v943, 568
          %v1015 = vadd.s32 %v943, 576
          %v1016 = vadd.s32 %v943, 584
          %v1017 = vadd.s32 %v943, 592
          %v1018 = vadd.s32 %v943, 600
          %v1019 = vadd.s32 %v943, 608
          %v1020 = vadd.s32 %v943, 616
          %v1021 = vadd.s32 %v943, 624
          %v1022 = vadd.s32 %v943, 632
          %v1023 = vadd.s32 %v943, 640
          %v1024 = vadd.s32 %v943, 648
          %v1025 = vadd.s32 %v943, 656
          %v1026 = vadd.s32 %v943, 664
          %vm1027 = vcmp.lt.s32.totalorder %v943, 582
          %vm1028 = vcmp.lt.s32.totalorder %v944, 582
          %vm1029 = vcmp.lt.s32.totalorder %v945, 582
          %vm1030 = vcmp.lt.s32.totalorder %v946, 582
          %vm1031 = vcmp.lt.s32.totalorder %v947, 582
          %vm1032 = vcmp.lt.s32.totalorder %v948, 582
          %vm1033 = vcmp.lt.s32.totalorder %v949, 582
          %vm1034 = vcmp.lt.s32.totalorder %v950, 582
          %vm1035 = vcmp.lt.s32.totalorder %v951, 582
          %vm1036 = vcmp.lt.s32.totalorder %v952, 582
          %vm1037 = vcmp.lt.s32.totalorder %v953, 582
          %vm1038 = vcmp.lt.s32.totalorder %v954, 582
          %vm1039 = vcmp.lt.s32.totalorder %v955, 582
          %vm1040 = vcmp.lt.s32.totalorder %v956, 582
          %vm1041 = vcmp.lt.s32.totalorder %v957, 582
          %vm1042 = vcmp.lt.s32.totalorder %v958, 582
          %vm1043 = vcmp.lt.s32.totalorder %v959, 582
          %vm1044 = vcmp.lt.s32.totalorder %v960, 582
          %vm1045 = vcmp.lt.s32.totalorder %v961, 582
          %vm1046 = vcmp.lt.s32.totalorder %v962, 582
          %vm1047 = vcmp.lt.s32.totalorder %v963, 582
          %vm1048 = vcmp.lt.s32.totalorder %v964, 582
          %vm1049 = vcmp.lt.s32.totalorder %v965, 582
          %vm1050 = vcmp.lt.s32.totalorder %v966, 582
          %vm1051 = vcmp.lt.s32.totalorder %v967, 582
          %vm1052 = vcmp.lt.s32.totalorder %v968, 582
          %vm1053 = vcmp.lt.s32.totalorder %v969, 582
          %vm1054 = vcmp.lt.s32.totalorder %v970, 582
          %vm1055 = vcmp.lt.s32.totalorder %v971, 582
          %vm1056 = vcmp.lt.s32.totalorder %v972, 582
          %vm1057 = vcmp.lt.s32.totalorder %v973, 582
          %vm1058 = vcmp.lt.s32.totalorder %v974, 582
          %vm1059 = vcmp.lt.s32.totalorder %v975, 582
          %vm1060 = vcmp.lt.s32.totalorder %v976, 582
          %vm1061 = vcmp.lt.s32.totalorder %v977, 582
          %vm1062 = vcmp.lt.s32.totalorder %v978, 582
          %vm1063 = vcmp.lt.s32.totalorder %v979, 582
          %vm1064 = vcmp.lt.s32.totalorder %v980, 582
          %vm1065 = vcmp.lt.s32.totalorder %v981, 582
          %vm1066 = vcmp.lt.s32.totalorder %v982, 582
          %vm1067 = vcmp.lt.s32.totalorder %v983, 582
          %vm1068 = vcmp.lt.s32.totalorder %v984, 582
          %vm1069 = vcmp.lt.s32.totalorder %v985, 582
          %vm1070 = vcmp.lt.s32.totalorder %v986, 582
          %vm1071 = vcmp.lt.s32.totalorder %v987, 582
          %vm1072 = vcmp.lt.s32.totalorder %v988, 582
          %vm1073 = vcmp.lt.s32.totalorder %v989, 582
          %vm1074 = vcmp.lt.s32.totalorder %v990, 582
          %vm1075 = vcmp.lt.s32.totalorder %v991, 582
          %vm1076 = vcmp.lt.s32.totalorder %v992, 582
          %vm1077 = vcmp.lt.s32.totalorder %v993, 582
          %vm1078 = vcmp.lt.s32.totalorder %v994, 582
          %vm1079 = vcmp.lt.s32.totalorder %v995, 582
          %vm1080 = vcmp.lt.s32.totalorder %v996, 582
          %vm1081 = vcmp.lt.s32.totalorder %v997, 582
          %vm1082 = vcmp.lt.s32.totalorder %v998, 582
          %vm1083 = vcmp.lt.s32.totalorder %v999, 582
          %vm1084 = vcmp.lt.s32.totalorder %v1000, 582
          %vm1085 = vcmp.lt.s32.totalorder %v1001, 582
          %vm1086 = vcmp.lt.s32.totalorder %v1002, 582
          %vm1087 = vcmp.lt.s32.totalorder %v1003, 582
          %vm1088 = vcmp.lt.s32.totalorder %v1004, 582
          %vm1089 = vcmp.lt.s32.totalorder %v1005, 582
          %vm1090 = vcmp.lt.s32.totalorder %v1006, 582
          %vm1091 = vcmp.lt.s32.totalorder %v1007, 582
          %vm1092 = vcmp.lt.s32.totalorder %v1008, 582
          %vm1093 = vcmp.lt.s32.totalorder %v1009, 582
          %vm1094 = vcmp.lt.s32.totalorder %v1010, 582
          %vm1095 = vcmp.lt.s32.totalorder %v1011, 582
          %vm1096 = vcmp.lt.s32.totalorder %v1012, 582
          %vm1097 = vcmp.lt.s32.totalorder %v1013, 582
          %vm1098 = vcmp.lt.s32.totalorder %v1014, 582
          %vm1099 = vcmp.lt.s32.totalorder %v1015, 582
          %vm1100 = vcmp.lt.s32.totalorder %v1016, 582
          %vm1101 = vcmp.lt.s32.totalorder %v1017, 582
          %vm1102 = vcmp.lt.s32.totalorder %v1018, 582
          %vm1103 = vcmp.lt.s32.totalorder %v1019, 582
          %vm1104 = vcmp.lt.s32.totalorder %v1020, 582
          %vm1105 = vcmp.lt.s32.totalorder %v1021, 582
          %vm1106 = vcmp.lt.s32.totalorder %v1022, 582
          %vm1107 = vcmp.lt.s32.totalorder %v1023, 582
          %vm1108 = vcmp.lt.s32.totalorder %v1024, 582
          %vm1109 = vcmp.lt.s32.totalorder %v1025, 582
          %vm1110 = vcmp.lt.s32.totalorder %v1026, 582
          %v1111 = vsel %vm1027, %v682, 0.0
          %v1112 = vsel %vm1028, %v683, 0.0
          %v1113 = vsel %vm1029, %v684, 0.0
          %v1114 = vsel %vm1030, %v685, 0.0
          %v1115 = vsel %vm1031, %v686, 0.0
          %v1116 = vsel %vm1032, %v687, 0.0
          %v1117 = vsel %vm1033, %v688, 0.0
          %v1118 = vsel %vm1034, %v689, 0.0
          %v1119 = vsel %vm1035, %v690, 0.0
          %v1120 = vsel %vm1036, %v691, 0.0
          %v1121 = vsel %vm1037, %v692, 0.0
          %v1122 = vsel %vm1038, %v693, 0.0
          %v1123 = vsel %vm1039, %v694, 0.0
          %v1124 = vsel %vm1040, %v695, 0.0
          %v1125 = vsel %vm1041, %v696, 0.0
          %v1126 = vsel %vm1042, %v697, 0.0
          %v1127 = vsel %vm1043, %v698, 0.0
          %v1128 = vsel %vm1044, %v699, 0.0
          %v1129 = vsel %vm1045, %v700, 0.0
          %v1130 = vsel %vm1046, %v701, 0.0
          %v1131 = vsel %vm1047, %v702, 0.0
          %v1132 = vsel %vm1048, %v703, 0.0
          %v1133 = vsel %vm1049, %v704, 0.0
          %v1134 = vsel %vm1050, %v705, 0.0
          %v1135 = vsel %vm1051, %v706, 0.0
          %v1136 = vsel %vm1052, %v707, 0.0
          %v1137 = vsel %vm1053, %v708, 0.0
          %v1138 = vsel %vm1054, %v709, 0.0
          %v1139 = vsel %vm1055, %v710, 0.0
          %v1140 = vsel %vm1056, %v711, 0.0
          %v1141 = vsel %vm1057, %v712, 0.0
          %v1142 = vsel %vm1058, %v713, 0.0
          %v1143 = vsel %vm1059, %v714, 0.0
          %v1144 = vsel %vm1060, %v715, 0.0
          %v1145 = vsel %vm1061, %v716, 0.0
          %v1146 = vsel %vm1062, %v717, 0.0
          %v1147 = vsel %vm1063, %v718, 0.0
          %v1148 = vsel %vm1064, %v719, 0.0
          %v1149 = vsel %vm1065, %v720, 0.0
          %v1150 = vsel %vm1066, %v721, 0.0
          %v1151 = vsel %vm1067, %v722, 0.0
          %v1152 = vsel %vm1068, %v723, 0.0
          %v1153 = vsel %vm1069, %v724, 0.0
          %v1154 = vsel %vm1070, %v725, 0.0
          %v1155 = vsel %vm1071, %v726, 0.0
          %v1156 = vsel %vm1072, %v727, 0.0
          %v1157 = vsel %vm1073, %v728, 0.0
          %v1158 = vsel %vm1074, %v729, 0.0
          %v1159 = vsel %vm1075, %v730, 0.0
          %v1160 = vsel %vm1076, %v731, 0.0
          %v1161 = vsel %vm1077, %v732, 0.0
          %v1162 = vsel %vm1078, %v733, 0.0
          %v1163 = vsel %vm1079, %v734, 0.0
          %v1164 = vsel %vm1080, %v735, 0.0
          %v1165 = vsel %vm1081, %v736, 0.0
          %v1166 = vsel %vm1082, %v737, 0.0
          %v1167 = vsel %vm1083, %v738, 0.0
          %v1168 = vsel %vm1084, %v739, 0.0
          %v1169 = vsel %vm1085, %v740, 0.0
          %v1170 = vsel %vm1086, %v741, 0.0
          %v1171 = vsel %vm1087, %v742, 0.0
          %v1172 = vsel %vm1088, %v743, 0.0
          %v1173 = vsel %vm1089, %v744, 0.0
          %v1174 = vsel %vm1090, %v745, 0.0
          %v1175 = vsel %vm1091, %v746, 0.0
          %v1176 = vsel %vm1092, %v747, 0.0
          %v1177 = vsel %vm1093, %v748, 0.0
          %v1178 = vsel %vm1094, %v749, 0.0
          %v1179 = vsel %vm1095, %v750, 0.0
          %v1180 = vsel %vm1096, %v751, 0.0
          %v1181 = vsel %vm1097, %v752, 0.0
          %v1182 = vsel %vm1098, %v753, 0.0
          %v1183 = vsel %vm1099, %v754, 0.0
          %v1184 = vsel %vm1100, %v755, 0.0
          %v1185 = vsel %vm1101, %v756, 0.0
          %v1186 = vsel %vm1102, %v757, 0.0
          %v1187 = vsel %vm1103, %v758, 0.0
          %v1188 = vsel %vm1104, %v759, 0.0
          %v1189 = vsel %vm1105, %v760, 0.0
          %v1190 = vsel %vm1106, %v761, 0.0
          %v1191 = vsel %vm1107, %v762, 0.0
          %v1192 = vsel %vm1108, %v763, 0.0
          %v1193 = vsel %vm1109, %v764, 0.0
          %v1194 = vsel %vm1110, %v765, 0.0
          %v1195 = vsel %vm1027, %v514, 0.0
          %v1196 = vsel %vm1028, %v515, 0.0
          %v1197 = vsel %vm1029, %v516, 0.0
          %v1198 = vsel %vm1030, %v517, 0.0
          %v1199 = vsel %vm1031, %v518, 0.0
          %v1200 = vsel %vm1032, %v519, 0.0
          %v1201 = vsel %vm1033, %v520, 0.0
          %v1202 = vsel %vm1034, %v521, 0.0
          %v1203 = vsel %vm1035, %v522, 0.0
          %v1204 = vsel %vm1036, %v523, 0.0
          %v1205 = vsel %vm1037, %v524, 0.0
          %v1206 = vsel %vm1038, %v525, 0.0
          %v1207 = vsel %vm1039, %v526, 0.0
          %v1208 = vsel %vm1040, %v527, 0.0
          %v1209 = vsel %vm1041, %v528, 0.0
          %v1210 = vsel %vm1042, %v529, 0.0
          %v1211 = vsel %vm1043, %v530, 0.0
          %v1212 = vsel %vm1044, %v531, 0.0
          %v1213 = vsel %vm1045, %v532, 0.0
          %v1214 = vsel %vm1046, %v533, 0.0
          %v1215 = vsel %vm1047, %v534, 0.0
          %v1216 = vsel %vm1048, %v535, 0.0
          %v1217 = vsel %vm1049, %v536, 0.0
          %v1218 = vsel %vm1050, %v537, 0.0
          %v1219 = vsel %vm1051, %v538, 0.0
          %v1220 = vsel %vm1052, %v539, 0.0
          %v1221 = vsel %vm1053, %v540, 0.0
          %v1222 = vsel %vm1054, %v541, 0.0
          %v1223 = vsel %vm1055, %v542, 0.0
          %v1224 = vsel %vm1056, %v543, 0.0
          %v1225 = vsel %vm1057, %v544, 0.0
          %v1226 = vsel %vm1058, %v545, 0.0
          %v1227 = vsel %vm1059, %v546, 0.0
          %v1228 = vsel %vm1060, %v547, 0.0
          %v1229 = vsel %vm1061, %v548, 0.0
          %v1230 = vsel %vm1062, %v549, 0.0
          %v1231 = vsel %vm1063, %v550, 0.0
          %v1232 = vsel %vm1064, %v551, 0.0
          %v1233 = vsel %vm1065, %v552, 0.0
          %v1234 = vsel %vm1066, %v553, 0.0
          %v1235 = vsel %vm1067, %v554, 0.0
          %v1236 = vsel %vm1068, %v555, 0.0
          %v1237 = vsel %vm1069, %v556, 0.0
          %v1238 = vsel %vm1070, %v557, 0.0
          %v1239 = vsel %vm1071, %v558, 0.0
          %v1240 = vsel %vm1072, %v559, 0.0
          %v1241 = vsel %vm1073, %v560, 0.0
          %v1242 = vsel %vm1074, %v561, 0.0
          %v1243 = vsel %vm1075, %v562, 0.0
          %v1244 = vsel %vm1076, %v563, 0.0
          %v1245 = vsel %vm1077, %v564, 0.0
          %v1246 = vsel %vm1078, %v565, 0.0
          %v1247 = vsel %vm1079, %v566, 0.0
          %v1248 = vsel %vm1080, %v567, 0.0
          %v1249 = vsel %vm1081, %v568, 0.0
          %v1250 = vsel %vm1082, %v569, 0.0
          %v1251 = vsel %vm1083, %v570, 0.0
          %v1252 = vsel %vm1084, %v571, 0.0
          %v1253 = vsel %vm1085, %v572, 0.0
          %v1254 = vsel %vm1086, %v573, 0.0
          %v1255 = vsel %vm1087, %v574, 0.0
          %v1256 = vsel %vm1088, %v575, 0.0
          %v1257 = vsel %vm1089, %v576, 0.0
          %v1258 = vsel %vm1090, %v577, 0.0
          %v1259 = vsel %vm1091, %v578, 0.0
          %v1260 = vsel %vm1092, %v579, 0.0
          %v1261 = vsel %vm1093, %v580, 0.0
          %v1262 = vsel %vm1094, %v581, 0.0
          %v1263 = vsel %vm1095, %v582, 0.0
          %v1264 = vsel %vm1096, %v583, 0.0
          %v1265 = vsel %vm1097, %v584, 0.0
          %v1266 = vsel %vm1098, %v585, 0.0
          %v1267 = vsel %vm1099, %v586, 0.0
          %v1268 = vsel %vm1100, %v587, 0.0
          %v1269 = vsel %vm1101, %v588, 0.0
          %v1270 = vsel %vm1102, %v589, 0.0
          %v1271 = vsel %vm1103, %v590, 0.0
          %v1272 = vsel %vm1104, %v591, 0.0
          %v1273 = vsel %vm1105, %v592, 0.0
          %v1274 = vsel %vm1106, %v593, 0.0
          %v1275 = vsel %vm1107, %v594, 0.0
          %v1276 = vsel %vm1108, %v595, 0.0
          %v1277 = vsel %vm1109, %v596, 0.0
          %v1278 = vsel %vm1110, %v597, 0.0
          %v1279 = vadd.f32 %v1111, %v1112
          %v1280 = vadd.f32 %v1279, %v1113
          %v1281 = vadd.f32 %v1280, %v1114
          %v1282 = vadd.f32 %v1281, %v1115
          %v1283 = vadd.f32 %v1282, %v1116
          %v1284 = vadd.f32 %v1283, %v1117
          %v1285 = vadd.f32 %v1284, %v1118
          %v1286 = vadd.f32 %v1285, %v1119
          %v1287 = vadd.f32 %v1286, %v1120
          %v1288 = vadd.f32 %v1287, %v1121
          %v1289 = vadd.f32 %v1288, %v1122
          %v1290 = vadd.f32 %v1289, %v1123
          %v1291 = vadd.f32 %v1290, %v1124
          %v1292 = vadd.f32 %v1291, %v1125
          %v1293 = vadd.f32 %v1292, %v1126
          %v1294 = vadd.f32 %v1293, %v1127
          %v1295 = vadd.f32 %v1294, %v1128
          %v1296 = vadd.f32 %v1295, %v1129
          %v1297 = vadd.f32 %v1296, %v1130
          %v1298 = vadd.f32 %v1297, %v1131
          %v1299 = vadd.f32 %v1298, %v1132
          %v1300 = vadd.f32 %v1299, %v1133
          %v1301 = vadd.f32 %v1300, %v1134
          %v1302 = vadd.f32 %v1301, %v1135
          %v1303 = vadd.f32 %v1302, %v1136
          %v1304 = vadd.f32 %v1303, %v1137
          %v1305 = vadd.f32 %v1304, %v1138
          %v1306 = vadd.f32 %v1305, %v1139
          %v1307 = vadd.f32 %v1306, %v1140
          %v1308 = vadd.f32 %v1307, %v1141
          %v1309 = vadd.f32 %v1308, %v1142
          %v1310 = vadd.f32 %v1309, %v1143
          %v1311 = vadd.f32 %v1310, %v1144
          %v1312 = vadd.f32 %v1311, %v1145
          %v1313 = vadd.f32 %v1312, %v1146
          %v1314 = vadd.f32 %v1313, %v1147
          %v1315 = vadd.f32 %v1314, %v1148
          %v1316 = vadd.f32 %v1315, %v1149
          %v1317 = vadd.f32 %v1316, %v1150
          %v1318 = vadd.f32 %v1317, %v1151
          %v1319 = vadd.f32 %v1318, %v1152
          %v1320 = vadd.f32 %v1319, %v1153
          %v1321 = vadd.f32 %v1320, %v1154
          %v1322 = vadd.f32 %v1321, %v1155
          %v1323 = vadd.f32 %v1322, %v1156
          %v1324 = vadd.f32 %v1323, %v1157
          %v1325 = vadd.f32 %v1324, %v1158
          %v1326 = vadd.f32 %v1325, %v1159
          %v1327 = vadd.f32 %v1326, %v1160
          %v1328 = vadd.f32 %v1327, %v1161
          %v1329 = vadd.f32 %v1328, %v1162
          %v1330 = vadd.f32 %v1329, %v1163
          %v1331 = vadd.f32 %v1330, %v1164
          %v1332 = vadd.f32 %v1331, %v1165
          %v1333 = vadd.f32 %v1332, %v1166
          %v1334 = vadd.f32 %v1333, %v1167
          %v1335 = vadd.f32 %v1334, %v1168
          %v1336 = vadd.f32 %v1335, %v1169
          %v1337 = vadd.f32 %v1336, %v1170
          %v1338 = vadd.f32 %v1337, %v1171
          %v1339 = vadd.f32 %v1338, %v1172
          %v1340 = vadd.f32 %v1339, %v1173
          %v1341 = vadd.f32 %v1340, %v1174
          %v1342 = vadd.f32 %v1341, %v1175
          %v1343 = vadd.f32 %v1342, %v1176
          %v1344 = vadd.f32 %v1343, %v1177
          %v1345 = vadd.f32 %v1344, %v1178
          %v1346 = vadd.f32 %v1345, %v1179
          %v1347 = vadd.f32 %v1346, %v1180
          %v1348 = vadd.f32 %v1347, %v1181
          %v1349 = vadd.f32 %v1348, %v1182
          %v1350 = vadd.f32 %v1349, %v1183
          %v1351 = vadd.f32 %v1350, %v1184
          %v1352 = vadd.f32 %v1351, %v1185
          %v1353 = vadd.f32 %v1352, %v1186
          %v1354 = vadd.f32 %v1353, %v1187
          %v1355 = vadd.f32 %v1354, %v1188
          %v1356 = vadd.f32 %v1355, %v1189
          %v1357 = vadd.f32 %v1356, %v1190
          %v1358 = vadd.f32 %v1357, %v1191
          %v1359 = vadd.f32 %v1358, %v1192
          %v1360 = vadd.f32 %v1359, %v1193
          %v1361 = vadd.f32 %v1360, %v1194
          %1362 = vst [vmem:[%s244] sm:$0xff] %v1361
          %v1363 = vadd.f32 %v1195, %v1196
          %v1364 = vadd.f32 %v1363, %v1197
          %v1365 = vadd.f32 %v1364, %v1198
          %v1366 = vadd.f32 %v1365, %v1199
          %v1367 = vadd.f32 %v1366, %v1200
          %v1368 = vadd.f32 %v1367, %v1201
          %v1369 = vadd.f32 %v1368, %v1202
          %v1370 = vadd.f32 %v1369, %v1203
          %v1371 = vadd.f32 %v1370, %v1204
          %v1372 = vadd.f32 %v1371, %v1205
          %v1373 = vadd.f32 %v1372, %v1206
          %v1374 = vadd.f32 %v1373, %v1207
          %v1375 = vadd.f32 %v1374, %v1208
          %v1376 = vadd.f32 %v1375, %v1209
          %v1377 = vadd.f32 %v1376, %v1210
          %v1378 = vadd.f32 %v1377, %v1211
          %v1379 = vadd.f32 %v1378, %v1212
          %v1380 = vadd.f32 %v1379, %v1213
          %v1381 = vadd.f32 %v1380, %v1214
          %v1382 = vadd.f32 %v1381, %v1215
          %v1383 = vadd.f32 %v1382, %v1216
          %v1384 = vadd.f32 %v1383, %v1217
          %v1385 = vadd.f32 %v1384, %v1218
          %v1386 = vadd.f32 %v1385, %v1219
          %v1387 = vadd.f32 %v1386, %v1220
          %v1388 = vadd.f32 %v1387, %v1221
          %v1389 = vadd.f32 %v1388, %v1222
          %v1390 = vadd.f32 %v1389, %v1223
          %v1391 = vadd.f32 %v1390, %v1224
          %v1392 = vadd.f32 %v1391, %v1225
          %v1393 = vadd.f32 %v1392, %v1226
          %v1394 = vadd.f32 %v1393, %v1227
          %v1395 = vadd.f32 %v1394, %v1228
          %v1396 = vadd.f32 %v1395, %v1229
          %v1397 = vadd.f32 %v1396, %v1230
          %v1398 = vadd.f32 %v1397, %v1231
          %v1399 = vadd.f32 %v1398, %v1232
          %v1400 = vadd.f32 %v1399, %v1233
          %v1401 = vadd.f32 %v1400, %v1234
          %v1402 = vadd.f32 %v1401, %v1235
          %v1403 = vadd.f32 %v1402, %v1236
          %v1404 = vadd.f32 %v1403, %v1237
          %v1405 = vadd.f32 %v1404, %v1238
          %v1406 = vadd.f32 %v1405, %v1239
          %v1407 = vadd.f32 %v1406, %v1240
          %v1408 = vadd.f32 %v1407, %v1241
          %v1409 = vadd.f32 %v1408, %v1242
          %v1410 = vadd.f32 %v1409, %v1243
          %v1411 = vadd.f32 %v1410, %v1244
          %v1412 = vadd.f32 %v1411, %v1245
          %v1413 = vadd.f32 %v1412, %v1246
          %v1414 = vadd.f32 %v1413, %v1247
          %v1415 = vadd.f32 %v1414, %v1248
          %v1416 = vadd.f32 %v1415, %v1249
          %v1417 = vadd.f32 %v1416, %v1250
          %v1418 = vadd.f32 %v1417, %v1251
          %v1419 = vadd.f32 %v1418, %v1252
          %v1420 = vadd.f32 %v1419, %v1253
          %v1421 = vadd.f32 %v1420, %v1254
          %v1422 = vadd.f32 %v1421, %v1255
          %v1423 = vadd.f32 %v1422, %v1256
          %v1424 = vadd.f32 %v1423, %v1257
          %v1425 = vadd.f32 %v1424, %v1258
          %v1426 = vadd.f32 %v1425, %v1259
          %v1427 = vadd.f32 %v1426, %v1260
          %v1428 = vadd.f32 %v1427, %v1261
          %v1429 = vadd.f32 %v1428, %v1262
          %v1430 = vadd.f32 %v1429, %v1263
          %v1431 = vadd.f32 %v1430, %v1264
          %v1432 = vadd.f32 %v1431, %v1265
          %v1433 = vadd.f32 %v1432, %v1266
          %v1434 = vadd.f32 %v1433, %v1267
          %v1435 = vadd.f32 %v1434, %v1268
          %v1436 = vadd.f32 %v1435, %v1269
          %v1437 = vadd.f32 %v1436, %v1270
          %v1438 = vadd.f32 %v1437, %v1271
          %v1439 = vadd.f32 %v1438, %v1272
          %v1440 = vadd.f32 %v1439, %v1273
          %v1441 = vadd.f32 %v1440, %v1274
          %v1442 = vadd.f32 %v1441, %v1275
          %v1443 = vadd.f32 %v1442, %v1276
          %v1444 = vadd.f32 %v1443, %v1277
          %v1445 = vadd.f32 %v1444, %v1278
          %1446 = vst [vmem:[%s251] sm:$0xff] %v1445
        $region44: #{tpu_custom_call.1} parent=27 // pred_fallthru
          _
        %s1447 = sand.u32 %s87, 1
        %s1448 = scalar_lea.sflag [#allocation4], %s1447
        %s1449 = sand.u32 %s87, 1
        %s1450 = smul.addr %s1449, 8
        %s1451 = scalar_lea.vmem [#allocation7], %s1450
        %s1452 = sand.u32 %s113, 1
        %s1453 = scalar_lea.sflag [#allocation9], %s1452
        %s1454 = sand.u32 %s113, 1
        %s1455 = smul.addr %s1454, 8
        %s1456 = scalar_lea.vmem [#allocation8], %s1455
        // Predicated region
        $region45: #{tpu_custom_call.1} parent=27 // pred_check
          %p1457 = pneg %p97
        $region46: #{tpu_custom_call.1} parent=27 // pred_check_branch
          %1459 = sbr.rel (%p1457) target = $region48
        $region47: #{tpu_custom_call.1} parent=27 // pred_region
          %s1461 = ssub.s32 128, 128
          %1462 = vsyncadd %s1448, %s1461
          %s1463 = smul.addr %s27, 128
          %s1464 = scalar_lea.hbm %s2, %s1463
          %s1466 = sshll.u32 %s1451, 4
          %s1467 = int_to_ptr.vmem [resolvable:$true] %s1466
          %1469 = dma.vmem_to_hbm [thread:$0]  %s1467, 128, %s1464, %s1448
        $region48: #{tpu_custom_call.1} parent=27 // pred_fallthru
          _
        // Predicated region
        $region49: #{tpu_custom_call.1} parent=27 // pred_check
          %p1470 = pneg %p123
        $region50: #{tpu_custom_call.1} parent=27 // pred_check_branch
          %1472 = sbr.rel (%p1470) target = $region52
        $region51: #{tpu_custom_call.1} parent=27 // pred_region
          %s1474 = ssub.s32 128, 128
          %1475 = vsyncadd %s1453, %s1474
          %s1476 = smul.addr %s27, 128
          %s1477 = scalar_lea.hbm %s3, %s1476
          %s1479 = sshll.u32 %s1456, 4
          %s1480 = int_to_ptr.vmem [resolvable:$true] %s1479
          %1482 = dma.vmem_to_hbm [thread:$0]  %s1480, 128, %s1477, %s1453
        $region52: #{tpu_custom_call.1} parent=27 // pred_fallthru
          _
      $region28: #{tpu_custom_call.1} parent=5 // pred_fallthru
        _
      %p1483 = scmp.le.s32.totalorder 2, %s22
      // Predicated region
      $region53: #{tpu_custom_call.1} parent=5 // pred_check
        %p1484 = pneg %p1483
      $region54: #{tpu_custom_call.1} parent=5 // pred_check_branch
        %1486 = sbr.rel (%p1484) target = $region56
      $region55: #{tpu_custom_call.1} parent=5 // pred_region
        %s1487 = ssub.s32 %s22, 2
        // Predicated region
        $region57: #{tpu_custom_call.1} parent=55 // pred_check
          %p1488 = pneg %p103
        $region58: #{tpu_custom_call.1} parent=55 // pred_check_branch
          %1490 = sbr.rel (%p1488) target = $region60
        $region59: #{tpu_custom_call.1} parent=55 // pred_region
          %s1491 = sand.u32 %s88, 1
          %s1492 = scalar_lea.sflag [#allocation4], %s1491
          %s1493 = sand.u32 %s88, 1
          %s1494 = smul.addr %s1493, 8
          %s1495 = scalar_lea.vmem [#allocation7], %s1494
          %1496 = dma.done %s1492, 128
        $region60: #{tpu_custom_call.1} parent=55 // pred_fallthru
          _
        // Predicated region
        $region61: #{tpu_custom_call.1} parent=55 // pred_check
          %p1497 = pneg %p129
        $region62: #{tpu_custom_call.1} parent=55 // pred_check_branch
          %1499 = sbr.rel (%p1497) target = $region64
        $region63: #{tpu_custom_call.1} parent=55 // pred_region
          %s1500 = sand.u32 %s114, 1
          %s1501 = scalar_lea.sflag [#allocation9], %s1500
          %s1502 = sand.u32 %s114, 1
          %s1503 = smul.addr %s1502, 8
          %s1504 = scalar_lea.vmem [#allocation8], %s1503
          %1505 = dma.done %s1501, 128
        $region64: #{tpu_custom_call.1} parent=55 // pred_fallthru
          _
      $region56: #{tpu_custom_call.1} parent=5 // pred_fallthru
        _
    $region6: #{tpu_custom_call.1} parent=1 // loop_footer
      %s26 = sadd.s32 1, %s22
    $region7: #{tpu_custom_call.1} parent=1 // loop_footer_branch
      %21 = sbr.rel target = $region3
    $region8: #{tpu_custom_call.1} parent=1 // loop_exit
      _
    %1506 = vsyncpa [#allocation3], 1
    %s1507 = scalar_lea.sflag [#allocation3], 1
    %1508 = vsyncpa %s1507, 1
    %1509 = vsyncpa [#allocation6], 1
    %s1510 = scalar_lea.sflag [#allocation6], 1
    %1511 = vsyncpa %s1510, 1
    %1512 = vsyncpa [#allocation4], 1
    %s1513 = scalar_lea.sflag [#allocation4], 1
    %1514 = vsyncpa %s1513, 1
    %1515 = vsyncpa [#allocation9], 1
    %s1516 = scalar_lea.sflag [#allocation9], 1
    %1517 = vsyncpa %s1516, 1

</llo_original>
